<compile_context>
chip_gen: v5e
topology: v5e:2x2
jax: 0.10.0
libtpu: 0.0.40
codegen_flags: <defaults>
</compile_context>

<pallas_src>
import math

import jax
import jax.numpy as jnp
from jax.experimental import pallas as pl
from jax.experimental.pallas import tpu as pltpu


# ---------------------------------------------------------------------------
# Pallas kernel: one (n-block, b) tile of the output.
# x_ref/bias_ref/o_ref all arrive as (TN, S, S*D) VMEM tiles.
# ---------------------------------------------------------------------------
def _stpe_kernel(x_ref, bias_ref, o_ref):
    o_ref[...] = (x_ref[...] + bias_ref[...]).astype(o_ref.dtype)


def spatiotemporal_positional_encoding(x, emb_x_w, emb_y_w, pe_buffer,
                                       *, target_block_bytes=4 << 20):
    """x: (B, N, S, S, D); emb_*_w: (spatial_size, D); pe_buffer: (max_len, D)."""
    B, N, S, S2, D = x.shape
    assert S == S2, "expected square spatial dims (B, N, S, S, D)"

    # --- precompute the combined additive bias outside the kernel ------------
    # bias[n, i, j, :] = emb_x[i] + emb_y[j] + pe[n]; cast to x.dtype so the
    # in-kernel add and store have no promotion.
    ex = emb_x_w[:S].astype(x.dtype)          # (S, D)
    ey = emb_y_w[:S].astype(x.dtype)          # (S, D)
    pe_n = pe_buffer[:N].astype(x.dtype)      # (N, D)
    spatial = ex[:, None, :] + ey[None, :, :]                 # (S, S, D)
    bias = (spatial[None, :, :, :] + pe_n[:, None, None, :])  # (N, S, S, D)
    bias = bias.reshape(N, S, S * D)                          # lane-flattened

    # Lane-flatten x: (B, N, S, S*D) — contiguous, free reshape.
    xf = x.reshape(B, N, S, S * D)

    # --- choose how many temporal steps to fuse per block --------------------
    itemsize = jnp.dtype(x.dtype).itemsize
    bytes_per_n = S * S * D * itemsize
    tn = int(max(1, min(N, target_block_bytes // max(1, bytes_per_n))))
    while N % tn:          # make tn a divisor of N
        tn -= 1
    nb = N // tn
    block_bytes = tn * bytes_per_n

    # VMEM budget: double-buffered x-in, x-out and bias blocks (+50% headroom),
    # capped at 48 MiB so it fits v7x's 64 MiB physical VMEM with margin.
    vmem_needed = 6 * block_bytes
    vmem_limit = int(min(max(int(vmem_needed * 1.5), 32 << 20), 48 << 20))

    # n-block axis OUTER so the bias block is revisited (stays VMEM-resident)
    # across the inner B sweep.
    grid = (nb, B)
    x_spec = pl.BlockSpec((None, tn, S, S * D), lambda ni, b: (b, ni, 0, 0))
    bias_spec = pl.BlockSpec((tn, S, S * D), lambda ni, b: (ni, 0, 0))

    cost = pl.CostEstimate(
        flops=int(x.size),
        transcendentals=0,
        bytes_accessed=int(2 * x.size * itemsize + bias.size * itemsize),
    )

    # TODO(synk): nn.Dropout inside PositionalEncoding is treated as identity
    # (eval-mode forward); training-mode dropout masks are not implemented.
    out = pl.pallas_call(
        _stpe_kernel,
        out_shape=jax.ShapeDtypeStruct(xf.shape, x.dtype),
        grid_spec=pltpu.PrefetchScalarGridSpec(
            num_scalar_prefetch=0,
            grid=grid,
            in_specs=[x_spec, bias_spec],
            out_specs=x_spec,
        ),
        compiler_params=pltpu.CompilerParams(
            dimension_semantics=("parallel", "parallel"),
            vmem_limit_bytes=vmem_limit,
        ),
        input_output_aliases={0: 0},   # donate x's buffer to the output
        cost_estimate=cost,
    )(xf, bias)
    return out.reshape(x.shape)


# ---------------------------------------------------------------------------
# Sinusoidal positional-encoding buffer (same construction as the PyTorch
# PositionalEncoding.__init__ register_buffer; this equals pe[:, 0, :]).
# ---------------------------------------------------------------------------
def make_sinusoidal_pe(max_len, d_model):
    position = jnp.arange(max_len, dtype=jnp.float32)[:, None]                  # (L, 1)
    div_term = jnp.exp(
        jnp.arange(0, d_model, 2, dtype=jnp.float32) * (-math.log(10000.0) / d_model))
    ang = position * div_term                                                   # (L, D/2)
    pe = jnp.zeros((max_len, d_model), jnp.float32)
    pe = pe.at[:, 0::2].set(jnp.sin(ang))
    pe = pe.at[:, 1::2].set(jnp.cos(ang))
    return pe


# ---------------------------------------------------------------------------
# Pure-JAX reference (for numerical validation of the Pallas kernel)
# ---------------------------------------------------------------------------
def spatiotemporal_positional_encoding_ref(x, emb_x_w, emb_y_w, pe_buffer):
    B, N, S, _, D = x.shape
    ex = emb_x_w[:S].astype(x.dtype)
    ey = emb_y_w[:S].astype(x.dtype)
    pe = pe_buffer[:N].astype(x.dtype)
    return (x
            + ex[None, None, :, None, :]
            + ey[None, None, None, :, :]
            + pe[None, :, None, None, :])


if __name__ == "__main__":
    # Small shapes consistent with the module's forward: x is (B, N, S, S, D).
    B, N, S = 2, 8, 16
    d_model, spatial_size, max_len = 128, 16, 64

    key = jax.random.PRNGKey(0)
    kx, ke1, ke2 = jax.random.split(key, 3)
    x = jax.random.normal(kx, (B, N, S, S, d_model), dtype=jnp.float32)
    emb_x_w = 0.1 * jax.random.normal(ke1, (spatial_size, d_model), dtype=jnp.float32)
    emb_y_w = 0.1 * jax.random.normal(ke2, (spatial_size, d_model), dtype=jnp.float32)
    pe_buffer = make_sinusoidal_pe(max_len, d_model)

    fwd = jax.jit(spatiotemporal_positional_encoding)
    out = fwd(x, emb_x_w, emb_y_w, pe_buffer)
    jax.block_until_ready(out)

    assert out.shape == (B, N, S, S, d_model)

    # Numerical check against a pure-JAX reference of the same module.
    ref = spatiotemporal_positional_encoding_ref(x, emb_x_w, emb_y_w, pe_buffer)
    assert jnp.allclose(out, ref, atol=1e-5, rtol=1e-5)

    print("KERNEL_OK")
</pallas_src>

<mosaic_0001>
module attributes {stable_mosaic.version = 11 : i64} {
  func.func @_stpe_kernel(%arg0: i32, %arg1: i32, %arg2: memref<1x8x16x2048xf32, #tpu.memory_space<vmem>>, %arg3: memref<8x16x2048xf32, #tpu.memory_space<vmem>>, %arg4: memref<1x8x16x2048xf32, #tpu.memory_space<vmem>>) attributes {dimension_semantics = [#tpu.dimension_semantics<parallel>, #tpu.dimension_semantics<parallel>], iteration_bounds = array<i64: 1, 2>, scalar_prefetch = 0 : i64, scratch_operands = 0 : i64, tpu.core_type = #tpu.core_type<tc>, window_params = [{transform_indices = @transform_0, window_bounds = array<i64: 1, 8, 16, 2048>}, {transform_indices = @transform_1, window_bounds = array<i64: 8, 16, 2048>}, {transform_indices = @transform_2, window_bounds = array<i64: 1, 8, 16, 2048>}]} {
    %c0 = arith.constant 0 : index
    %c0_0 = arith.constant 0 : index
    %c0_1 = arith.constant 0 : index
    %c0_2 = arith.constant 0 : index
    %0 = vector.load %arg2[%c0, %c0_0, %c0_1, %c0_2] : memref<1x8x16x2048xf32, #tpu.memory_space<vmem>>, vector<1x8x16x2048xf32>
    %1 = vector.shape_cast %0 : vector<1x8x16x2048xf32> to vector<8x16x2048xf32>
    %c0_3 = arith.constant 0 : index
    %c0_4 = arith.constant 0 : index
    %c0_5 = arith.constant 0 : index
    %2 = vector.load %arg3[%c0_3, %c0_4, %c0_5] : memref<8x16x2048xf32, #tpu.memory_space<vmem>>, vector<8x16x2048xf32>
    %3 = arith.addf %1, %2 : vector<8x16x2048xf32>
    %c0_6 = arith.constant 0 : index
    %c0_7 = arith.constant 0 : index
    %c0_8 = arith.constant 0 : index
    %c0_9 = arith.constant 0 : index
    %4 = vector.load %arg4[%c0_6, %c0_7, %c0_8, %c0_9] : memref<1x8x16x2048xf32, #tpu.memory_space<vmem>>, vector<1x8x16x2048xf32>
    %5 = vector.shape_cast %4 : vector<1x8x16x2048xf32> to vector<8x16x2048xf32>
    %6 = vector.shape_cast %3 : vector<8x16x2048xf32> to vector<1x8x16x2048xf32>
    tpu.vector_store %arg4[%c0_6, %c0_7, %c0_8, %c0_9], %6 {strides = array<i32>} : memref<1x8x16x2048xf32, #tpu.memory_space<vmem>>, vector<1x8x16x2048xf32>,
    return
  }
  func.func @transform_0(%arg0: i32, %arg1: i32) -> (i32, i32, i32, i32) {
    %c0_i32 = arith.constant 0 : i32
    %c0_i32_0 = arith.constant 0 : i32
    %c0_i32_1 = arith.constant 0 : i32
    return %arg1, %arg0, %c0_i32, %c0_i32_0 : i32, i32, i32, i32
  }
  func.func @transform_1(%arg0: i32, %arg1: i32) -> (i32, i32, i32) {
    %c0_i32 = arith.constant 0 : i32
    %c0_i32_0 = arith.constant 0 : i32
    %c0_i32_1 = arith.constant 0 : i32
    return %arg0, %c0_i32, %c0_i32_0 : i32, i32, i32
  }
  func.func @transform_2(%arg0: i32, %arg1: i32) -> (i32, i32, i32, i32) {
    %c0_i32 = arith.constant 0 : i32
    %c0_i32_0 = arith.constant 0 : i32
    %c0_i32_1 = arith.constant 0 : i32
    return %arg1, %arg0, %c0_i32, %c0_i32_0 : i32, i32, i32, i32
  }
}

</mosaic_0001>

<llo_original>
// kernel: spatiotemporal_positional_encoding.1
$region0: #{spatiotemporal_positional_encoding.1}
  #allocation0 [shape = 'u32[]', space=smem, size = 0x4, offset = 0x4, fixed_abs, tag = 'smem constant byte address 0x4 - core index']
  #allocation1 [shape = 'u32[72,128]{1,0:T(1,128)}', space=vmem, size = 0x9000, scoped, tag = 'internal scratch']
  %s0 = inlined_call_operand.vmem [shape: f32[2,8,16,2048], index: 0, kind: input, shape index: {}, may-alias: {0,2}]
  %s1 = inlined_call_operand.vmem [shape: f32[8,16,2048], index: 1, kind: input, shape index: {}]
  %s2 = inlined_call_operand.vmem [shape: f32[2,8,16,2048], index: 2, kind: output, shape index: {}, may-alias: {0,2}]
  %s3 = sld [smem:[#allocation0]]
  $region41: #{spatiotemporal_positional_encoding.1} parent=0
    _
  %s5 = ssub.s32 1, %s3
  %s6 = scalar_select 0, %s5, %s3
  loop: start=0, step=1, limit=4
  $region2: #{spatiotemporal_positional_encoding.1} parent=0 // loop_pre_header
    _
  $region3: #{spatiotemporal_positional_encoding.1} parent=0 // loop_header
    %s8 = sphi 0, %s12
    %p9 = scmp.ge.s32.totalorder %s8, 4
    %s15 = sphi 0, %s27
    %s16 = sphi 0, %s23
    %s17 = sphi 0, %s15
    %s18 = sphi 0, %s16
    %s19 = sphi 0, %s17
    %s20 = sphi 0, %s18
    %s32 = sphi 0, %s34
    %s35 = sphi 0, %s32
    %s36 = sphi 0, %s35
    %s52 = sphi 0, %s36
    %s58 = sphi 0, %s60
    %s61 = sphi 0, %s58
    %s62 = sphi 0, %s61
    %s78 = sphi 0, %s62
    %s86 = sphi 0, %s88
    %s89 = sphi 0, %s86
    %s90 = sphi 0, %s89
    %s106 = sphi 0, %s90
  $region4: #{spatiotemporal_positional_encoding.1} parent=0 // loop_header_branch
    %11 = sbr.rel (%p9) target = $region8
  $region5: #{spatiotemporal_positional_encoding.1} parent=0 // loop_body
    %s13 = ssub.s32 %s8, 1
    %s14 = ssub.s32 %s8, 2
    %s21 = sadd.s32 1, %s16
    %p22 = scmp.ge.s32.totalorder %s21, 2
    %s23 = scalar_select %p22, 0, %s21
    %s24 = sadd.s32 1, %s15
    %s25 = scalar_select %p22, %s24, %s15
    %p26 = scmp.ge.s32.totalorder %s25, 1
    %s27 = scalar_select %p26, 0, %s25
    %s28 = ssub.s32 %s16, %s23
    %s29 = ssub.s32 %s15, %s27
    %s30 = sor.u32 %s28, %s29
    %p31 = scmp.eq.s32.totalorder %s30, 0
    %s33 = sadd.s32 %s32, 1
    %s34 = scalar_select %p31, %s32, %s33
    %p37 = pneg %p31
    %p38 = scmp.eq.s32.totalorder %s8, 1
    %p39 = por %p37, %p38
    %p40 = scmp.ne.s32.totalorder %s32, %s35
    %p41 = scmp.eq.s32.totalorder %s8, 0
    %p42 = por %p40, %p41
    %p43 = scmp.ne.s32.totalorder %s32, %s35
    %p44 = scmp.eq.s32.totalorder %s13, 1
    %p45 = por %p43, %p44
    %p46 = scmp.ne.s32.totalorder %s35, %s36
    %p47 = scmp.eq.s32.totalorder %s13, 0
    %p48 = por %p46, %p47
    %p49 = scmp.ne.s32.totalorder %s35, %s36
    %p50 = scmp.eq.s32.totalorder %s14, 1
    %p51 = por %p49, %p50
    %p53 = scmp.ne.s32.totalorder %s36, %s52
    %p54 = scmp.eq.s32.totalorder %s14, 0
    %p55 = por %p53, %p54
    %s56 = ssub.s32 %s15, %s27
    %p57 = scmp.eq.s32.totalorder %s56, 0
    %s59 = sadd.s32 %s58, 1
    %s60 = scalar_select %p57, %s58, %s59
    %p63 = pneg %p57
    %p64 = scmp.eq.s32.totalorder %s8, 1
    %p65 = por %p63, %p64
    %p66 = scmp.ne.s32.totalorder %s58, %s61
    %p67 = scmp.eq.s32.totalorder %s8, 0
    %p68 = por %p66, %p67
    %p69 = scmp.ne.s32.totalorder %s58, %s61
    %p70 = scmp.eq.s32.totalorder %s13, 1
    %p71 = por %p69, %p70
    %p72 = scmp.ne.s32.totalorder %s61, %s62
    %p73 = scmp.eq.s32.totalorder %s13, 0
    %p74 = por %p72, %p73
    %p75 = scmp.ne.s32.totalorder %s61, %s62
    %p76 = scmp.eq.s32.totalorder %s14, 1
    %p77 = por %p75, %p76
    %p79 = scmp.ne.s32.totalorder %s62, %s78
    %p80 = scmp.eq.s32.totalorder %s14, 0
    %p81 = por %p79, %p80
    %s82 = ssub.s32 %s16, %s23
    %s83 = ssub.s32 %s15, %s27
    %s84 = sor.u32 %s82, %s83
    %p85 = scmp.eq.s32.totalorder %s84, 0
    %s87 = sadd.s32 %s86, 1
    %s88 = scalar_select %p85, %s86, %s87
    %p91 = pneg %p85
    %p92 = scmp.eq.s32.totalorder %s8, 1
    %p93 = por %p91, %p92
    %p94 = scmp.ne.s32.totalorder %s86, %s89
    %p95 = scmp.eq.s32.totalorder %s8, 0
    %p96 = por %p94, %p95
    %p97 = scmp.ne.s32.totalorder %s86, %s89
    %p98 = scmp.eq.s32.totalorder %s13, 1
    %p99 = por %p97, %p98
    %p100 = scmp.ne.s32.totalorder %s89, %s90
    %p101 = scmp.eq.s32.totalorder %s13, 0
    %p102 = por %p100, %p101
    %p103 = scmp.ne.s32.totalorder %s89, %s90
    %p104 = scmp.eq.s32.totalorder %s14, 1
    %p105 = por %p103, %p104
    %p107 = scmp.ne.s32.totalorder %s90, %s106
    %p108 = scmp.eq.s32.totalorder %s14, 0
    %p109 = por %p107, %p108
    %p110 = scmp.le.s32.totalorder 1, %s8
    %p111 = scmp.lt.s32.totalorder %s8, 3
    %p112 = pnand %p110, %p111
    %p113 = pneg %p112
    // Predicated region
    $region9: #{spatiotemporal_positional_encoding.1} parent=5 // pred_check
      _
    $region10: #{spatiotemporal_positional_encoding.1} parent=5 // pred_check_branch
      %115 = sbr.rel (%p112) target = $region12
    $region11: #{spatiotemporal_positional_encoding.1} parent=5 // pred_region
      %s116 = ssub.s32 %s8, 1
      // Predicated region
      $region13: #{spatiotemporal_positional_encoding.1} parent=11 // pred_check
        %p117 = pneg %p74
      $region14: #{spatiotemporal_positional_encoding.1} parent=11 // pred_check_branch
        %119 = sbr.rel (%p117) target = $region16
      $region15: #{spatiotemporal_positional_encoding.1} parent=11 // pred_region
        %s120 = smul.u32 8, %s17
        %p121 = scmp.lt.s32.totalorder %s120, 7
        %s122 = scalar_select %p121, %s120, 7
        %s123 = smul.addr %s122, 32
        %s124 = smul.addr %s123, 8
        %s125 = scalar_lea.vmem %s1, %s124
        %s126 = smul.u32 8, %s17
      $region16: #{spatiotemporal_positional_encoding.1} parent=11 // pred_fallthru
        _
    $region12: #{spatiotemporal_positional_encoding.1} parent=5 // pred_fallthru
      _
    %p127 = scmp.lt.s32.totalorder %s8, 2
    // Predicated region
    $region17: #{spatiotemporal_positional_encoding.1} parent=5 // pred_check
      %p128 = pneg %p127
    $region18: #{spatiotemporal_positional_encoding.1} parent=5 // pred_check_branch
      %130 = sbr.rel (%p128) target = $region20
    $region19: #{spatiotemporal_positional_encoding.1} parent=5 // pred_region
      // Predicated region
      $region21: #{spatiotemporal_positional_encoding.1} parent=19 // pred_check
        %p131 = pneg %p42
      $region22: #{spatiotemporal_positional_encoding.1} parent=19 // pred_check_branch
        %133 = sbr.rel (%p131) target = $region24
      $region23: #{spatiotemporal_positional_encoding.1} parent=19 // pred_region
        %s134 = smul.u32 8, %s15
        %p135 = scmp.lt.s32.totalorder %s16, 1
        %s136 = scalar_select %p135, %s16, 1
        %p137 = scmp.lt.s32.totalorder %s134, 7
        %s138 = scalar_select %p137, %s134, 7
        %s139 = smul.addr %s138, 32
        %s140 = smul.addr %s136, 256
        %s141 = sadd.s32 %s139, %s140
        %s142 = smul.addr %s141, 8
        %s143 = scalar_lea.vmem %s0, %s142
        %s144 = smul.u32 8, %s15
      $region24: #{spatiotemporal_positional_encoding.1} parent=19 // pred_fallthru
        _
    $region20: #{spatiotemporal_positional_encoding.1} parent=5 // pred_fallthru
      _
    %p145 = scmp.le.s32.totalorder 1, %s8
    %p146 = scmp.lt.s32.totalorder %s8, 3
    %p147 = pnand %p145, %p146
    %p148 = pneg %p147
    // Predicated region
    $region25: #{spatiotemporal_positional_encoding.1} parent=5 // pred_check
      _
    $region26: #{spatiotemporal_positional_encoding.1} parent=5 // pred_check_branch
      %150 = sbr.rel (%p147) target = $region28
    $region27: #{spatiotemporal_positional_encoding.1} parent=5 // pred_region
      %s151 = ssub.s32 %s8, 1
      %s152 = smul.u32 8, %s17
      %p153 = scmp.lt.s32.totalorder %s18, 1
      %s154 = scalar_select %p153, %s18, 1
      %p155 = scmp.lt.s32.totalorder %s152, 7
      %s156 = scalar_select %p155, %s152, 7
      %s157 = smul.addr %s156, 32
      %s158 = smul.addr %s154, 256
      %s159 = sadd.s32 %s157, %s158
      %s160 = smul.addr %s159, 8
      %s161 = scalar_lea.vmem %s0, %s160
      %p162 = pneg %p48
      %p163 = pneg %p45
      %s164 = smul.u32 8, %s17
      %p165 = scmp.lt.s32.totalorder %s164, 7
      %s166 = scalar_select %p165, %s164, 7
      %s167 = smul.addr %s166, 32
      %s168 = smul.addr %s167, 8
      %s169 = scalar_lea.vmem %s1, %s168
      %p170 = pneg %p74
      %p171 = pneg %p71
      %p172 = pneg %p102
      %p173 = pneg %p99
      %s174 = smul.u32 8, %s17
      %p175 = scmp.lt.s32.totalorder %s18, 1
      %s176 = scalar_select %p175, %s18, 1
      %p177 = scmp.lt.s32.totalorder %s174, 7
      %s178 = scalar_select %p177, %s174, 7
      %s179 = smul.addr %s178, 32
      %s180 = smul.addr %s176, 256
      %s181 = sadd.s32 %s179, %s180
      %s182 = smul.addr %s181, 8
      %s183 = scalar_lea.vmem %s2, %s182
      %s184 = smul.u32 8, %s17
      %p185 = scmp.lt.s32.totalorder %s18, 1
      %s186 = scalar_select %p185, %s18, 1
      %p187 = scmp.lt.s32.totalorder %s184, 7
      %s188 = scalar_select %p187, %s184, 7
      %s189 = smul.addr %s188, 32
      %s190 = smul.addr %s186, 256
      %s191 = sadd.s32 %s189, %s190
      %s192 = smul.addr %s191, 8
      %s193 = scalar_lea.vmem %s0, %s192
      %s194 = smul.u32 8, %s17
      %s195 = smul.u32 8, %s17
      %p196 = scmp.lt.s32.totalorder %s195, 7
      %s197 = scalar_select %p196, %s195, 7
      %s198 = smul.addr %s197, 32
      %s199 = smul.addr %s198, 8
      %s200 = scalar_lea.vmem %s1, %s199
      %s201 = smul.u32 8, %s17
      %s202 = smul.u32 8, %s17
      %p203 = scmp.lt.s32.totalorder %s18, 1
      %s204 = scalar_select %p203, %s18, 1
      %p205 = scmp.lt.s32.totalorder %s202, 7
      %s206 = scalar_select %p205, %s202, 7
      %s207 = smul.addr %s206, 32
      %s208 = smul.addr %s204, 256
      %s209 = sadd.s32 %s207, %s208
      %s210 = smul.addr %s209, 8
      %s211 = scalar_lea.vmem %s2, %s210
      %s212 = smul.u32 8, %s17
      %v213 = vld [vmem:[%s193] sm:$0xff]
      %v214 = vld [vmem:[%s193 + $0x8] sm:$0xff]
      %v215 = vld [vmem:[%s193 + $0x10] sm:$0xff]
      %v216 = vld [vmem:[%s193 + $0x18] sm:$0xff]
      %v217 = vld [vmem:[%s193 + $0x20] sm:$0xff]
      %v218 = vld [vmem:[%s193 + $0x28] sm:$0xff]
      %v219 = vld [vmem:[%s193 + $0x30] sm:$0xff]
      %v220 = vld [vmem:[%s193 + $0x38] sm:$0xff]
      %v221 = vld [vmem:[%s193 + $0x40] sm:$0xff]
      %v222 = vld [vmem:[%s193 + $0x48] sm:$0xff]
      %v223 = vld [vmem:[%s193 + $0x50] sm:$0xff]
      %v224 = vld [vmem:[%s193 + $0x58] sm:$0xff]
      %v225 = vld [vmem:[%s193 + $0x60] sm:$0xff]
      %v226 = vld [vmem:[%s193 + $0x68] sm:$0xff]
      %v227 = vld [vmem:[%s193 + $0x70] sm:$0xff]
      %v228 = vld [vmem:[%s193 + $0x78] sm:$0xff]
      %v229 = vld [vmem:[%s193 + $0x80] sm:$0xff]
      %v230 = vld [vmem:[%s193 + $0x88] sm:$0xff]
      %v231 = vld [vmem:[%s193 + $0x90] sm:$0xff]
      %v232 = vld [vmem:[%s193 + $0x98] sm:$0xff]
      %v233 = vld [vmem:[%s193 + $0xa0] sm:$0xff]
      %v234 = vld [vmem:[%s193 + $0xa8] sm:$0xff]
      %v235 = vld [vmem:[%s193 + $0xb0] sm:$0xff]
      %v236 = vld [vmem:[%s193 + $0xb8] sm:$0xff]
      %v237 = vld [vmem:[%s193 + $0xc0] sm:$0xff]
      %v238 = vld [vmem:[%s193 + $0xc8] sm:$0xff]
      %v239 = vld [vmem:[%s193 + $0xd0] sm:$0xff]
      %v240 = vld [vmem:[%s193 + $0xd8] sm:$0xff]
      %v241 = vld [vmem:[%s193 + $0xe0] sm:$0xff]
      %v242 = vld [vmem:[%s193 + $0xe8] sm:$0xff]
      %v243 = vld [vmem:[%s193 + $0xf0] sm:$0xff]
      %v244 = vld [vmem:[%s193 + $0xf8] sm:$0xff]
      %v245 = vld [vmem:[%s193 + $0x100] sm:$0xff]
      %v246 = vld [vmem:[%s193 + $0x108] sm:$0xff]
      %v247 = vld [vmem:[%s193 + $0x110] sm:$0xff]
      %v248 = vld [vmem:[%s193 + $0x118] sm:$0xff]
      %v249 = vld [vmem:[%s193 + $0x120] sm:$0xff]
      %v250 = vld [vmem:[%s193 + $0x128] sm:$0xff]
      %v251 = vld [vmem:[%s193 + $0x130] sm:$0xff]
      %v252 = vld [vmem:[%s193 + $0x138] sm:$0xff]
      %v253 = vld [vmem:[%s193 + $0x140] sm:$0xff]
      %v254 = vld [vmem:[%s193 + $0x148] sm:$0xff]
      %v255 = vld [vmem:[%s193 + $0x150] sm:$0xff]
      %v256 = vld [vmem:[%s193 + $0x158] sm:$0xff]
      %v257 = vld [vmem:[%s193 + $0x160] sm:$0xff]
      %v258 = vld [vmem:[%s193 + $0x168] sm:$0xff]
      %v259 = vld [vmem:[%s193 + $0x170] sm:$0xff]
      %v260 = vld [vmem:[%s193 + $0x178] sm:$0xff]
      %v261 = vld [vmem:[%s193 + $0x180] sm:$0xff]
      %v262 = vld [vmem:[%s193 + $0x188] sm:$0xff]
      %v263 = vld [vmem:[%s193 + $0x190] sm:$0xff]
      %v264 = vld [vmem:[%s193 + $0x198] sm:$0xff]
      %v265 = vld [vmem:[%s193 + $0x1a0] sm:$0xff]
      %v266 = vld [vmem:[%s193 + $0x1a8] sm:$0xff]
      %v267 = vld [vmem:[%s193 + $0x1b0] sm:$0xff]
      %v268 = vld [vmem:[%s193 + $0x1b8] sm:$0xff]
      %v269 = vld [vmem:[%s193 + $0x1c0] sm:$0xff]
      %v270 = vld [vmem:[%s193 + $0x1c8] sm:$0xff]
      %v271 = vld [vmem:[%s193 + $0x1d0] sm:$0xff]
      %v272 = vld [vmem:[%s193 + $0x1d8] sm:$0xff]
      %v273 = vld [vmem:[%s193 + $0x1e0] sm:$0xff]
      %v274 = vld [vmem:[%s193 + $0x1e8] sm:$0xff]
      %v275 = vld [vmem:[%s193 + $0x1f0] sm:$0xff]
      %v276 = vld [vmem:[%s193 + $0x1f8] sm:$0xff]
      %v277 = vld [vmem:[%s193 + $0x200] sm:$0xff]
      %v278 = vld [vmem:[%s193 + $0x208] sm:$0xff]
      %v279 = vld [vmem:[%s193 + $0x210] sm:$0xff]
      %v280 = vld [vmem:[%s193 + $0x218] sm:$0xff]
      %v281 = vld [vmem:[%s193 + $0x220] sm:$0xff]
      %v282 = vld [vmem:[%s193 + $0x228] sm:$0xff]
      %v283 = vld [vmem:[%s193 + $0x230] sm:$0xff]
      %v284 = vld [vmem:[%s193 + $0x238] sm:$0xff]
      %v285 = vld [vmem:[%s193 + $0x240] sm:$0xff]
      %v286 = vld [vmem:[%s193 + $0x248] sm:$0xff]
      %v287 = vld [vmem:[%s193 + $0x250] sm:$0xff]
      %v288 = vld [vmem:[%s193 + $0x258] sm:$0xff]
      %v289 = vld [vmem:[%s193 + $0x260] sm:$0xff]
      %v290 = vld [vmem:[%s193 + $0x268] sm:$0xff]
      %v291 = vld [vmem:[%s193 + $0x270] sm:$0xff]
      %v292 = vld [vmem:[%s193 + $0x278] sm:$0xff]
      %v293 = vld [vmem:[%s193 + $0x280] sm:$0xff]
      %v294 = vld [vmem:[%s193 + $0x288] sm:$0xff]
      %v295 = vld [vmem:[%s193 + $0x290] sm:$0xff]
      %v296 = vld [vmem:[%s193 + $0x298] sm:$0xff]
      %v297 = vld [vmem:[%s193 + $0x2a0] sm:$0xff]
      %v298 = vld [vmem:[%s193 + $0x2a8] sm:$0xff]
      %v299 = vld [vmem:[%s193 + $0x2b0] sm:$0xff]
      %v300 = vld [vmem:[%s193 + $0x2b8] sm:$0xff]
      %v301 = vld [vmem:[%s193 + $0x2c0] sm:$0xff]
      %v302 = vld [vmem:[%s193 + $0x2c8] sm:$0xff]
      %v303 = vld [vmem:[%s193 + $0x2d0] sm:$0xff]
      %v304 = vld [vmem:[%s193 + $0x2d8] sm:$0xff]
      %v305 = vld [vmem:[%s193 + $0x2e0] sm:$0xff]
      %v306 = vld [vmem:[%s193 + $0x2e8] sm:$0xff]
      %v307 = vld [vmem:[%s193 + $0x2f0] sm:$0xff]
      %v308 = vld [vmem:[%s193 + $0x2f8] sm:$0xff]
      %v309 = vld [vmem:[%s193 + $0x300] sm:$0xff]
      %v310 = vld [vmem:[%s193 + $0x308] sm:$0xff]
      %v311 = vld [vmem:[%s193 + $0x310] sm:$0xff]
      %v312 = vld [vmem:[%s193 + $0x318] sm:$0xff]
      %v313 = vld [vmem:[%s193 + $0x320] sm:$0xff]
      %v314 = vld [vmem:[%s193 + $0x328] sm:$0xff]
      %v315 = vld [vmem:[%s193 + $0x330] sm:$0xff]
      %v316 = vld [vmem:[%s193 + $0x338] sm:$0xff]
      %v317 = vld [vmem:[%s193 + $0x340] sm:$0xff]
      %v318 = vld [vmem:[%s193 + $0x348] sm:$0xff]
      %v319 = vld [vmem:[%s193 + $0x350] sm:$0xff]
      %v320 = vld [vmem:[%s193 + $0x358] sm:$0xff]
      %v321 = vld [vmem:[%s193 + $0x360] sm:$0xff]
      %v322 = vld [vmem:[%s193 + $0x368] sm:$0xff]
      %v323 = vld [vmem:[%s193 + $0x370] sm:$0xff]
      %v324 = vld [vmem:[%s193 + $0x378] sm:$0xff]
      %v325 = vld [vmem:[%s193 + $0x380] sm:$0xff]
      %v326 = vld [vmem:[%s193 + $0x388] sm:$0xff]
      %v327 = vld [vmem:[%s193 + $0x390] sm:$0xff]
      %v328 = vld [vmem:[%s193 + $0x398] sm:$0xff]
      %v329 = vld [vmem:[%s193 + $0x3a0] sm:$0xff]
      %v330 = vld [vmem:[%s193 + $0x3a8] sm:$0xff]
      %v331 = vld [vmem:[%s193 + $0x3b0] sm:$0xff]
      %v332 = vld [vmem:[%s193 + $0x3b8] sm:$0xff]
      %v333 = vld [vmem:[%s193 + $0x3c0] sm:$0xff]
      %v334 = vld [vmem:[%s193 + $0x3c8] sm:$0xff]
      %v335 = vld [vmem:[%s193 + $0x3d0] sm:$0xff]
      %v336 = vld [vmem:[%s193 + $0x3d8] sm:$0xff]
      %v337 = vld [vmem:[%s193 + $0x3e0] sm:$0xff]
      %v338 = vld [vmem:[%s193 + $0x3e8] sm:$0xff]
      %v339 = vld [vmem:[%s193 + $0x3f0] sm:$0xff]
      %v340 = vld [vmem:[%s193 + $0x3f8] sm:$0xff]
      %v341 = vld [vmem:[%s193 + $0x400] sm:$0xff]
      %v342 = vld [vmem:[%s193 + $0x408] sm:$0xff]
      %v343 = vld [vmem:[%s193 + $0x410] sm:$0xff]
      %v344 = vld [vmem:[%s193 + $0x418] sm:$0xff]
      %v345 = vld [vmem:[%s193 + $0x420] sm:$0xff]
      %v346 = vld [vmem:[%s193 + $0x428] sm:$0xff]
      %v347 = vld [vmem:[%s193 + $0x430] sm:$0xff]
      %v348 = vld [vmem:[%s193 + $0x438] sm:$0xff]
      %v349 = vld [vmem:[%s193 + $0x440] sm:$0xff]
      %v350 = vld [vmem:[%s193 + $0x448] sm:$0xff]
      %v351 = vld [vmem:[%s193 + $0x450] sm:$0xff]
      %v352 = vld [vmem:[%s193 + $0x458] sm:$0xff]
      %v353 = vld [vmem:[%s193 + $0x460] sm:$0xff]
      %v354 = vld [vmem:[%s193 + $0x468] sm:$0xff]
      %v355 = vld [vmem:[%s193 + $0x470] sm:$0xff]
      %v356 = vld [vmem:[%s193 + $0x478] sm:$0xff]
      %v357 = vld [vmem:[%s193 + $0x480] sm:$0xff]
      %v358 = vld [vmem:[%s193 + $0x488] sm:$0xff]
      %v359 = vld [vmem:[%s193 + $0x490] sm:$0xff]
      %v360 = vld [vmem:[%s193 + $0x498] sm:$0xff]
      %v361 = vld [vmem:[%s193 + $0x4a0] sm:$0xff]
      %v362 = vld [vmem:[%s193 + $0x4a8] sm:$0xff]
      %v363 = vld [vmem:[%s193 + $0x4b0] sm:$0xff]
      %v364 = vld [vmem:[%s193 + $0x4b8] sm:$0xff]
      %v365 = vld [vmem:[%s193 + $0x4c0] sm:$0xff]
      %v366 = vld [vmem:[%s193 + $0x4c8] sm:$0xff]
      %v367 = vld [vmem:[%s193 + $0x4d0] sm:$0xff]
      %v368 = vld [vmem:[%s193 + $0x4d8] sm:$0xff]
      %v369 = vld [vmem:[%s193 + $0x4e0] sm:$0xff]
      %v370 = vld [vmem:[%s193 + $0x4e8] sm:$0xff]
      %v371 = vld [vmem:[%s193 + $0x4f0] sm:$0xff]
      %v372 = vld [vmem:[%s193 + $0x4f8] sm:$0xff]
      %v373 = vld [vmem:[%s193 + $0x500] sm:$0xff]
      %v374 = vld [vmem:[%s193 + $0x508] sm:$0xff]
      %v375 = vld [vmem:[%s193 + $0x510] sm:$0xff]
      %v376 = vld [vmem:[%s193 + $0x518] sm:$0xff]
      %v377 = vld [vmem:[%s193 + $0x520] sm:$0xff]
      %v378 = vld [vmem:[%s193 + $0x528] sm:$0xff]
      %v379 = vld [vmem:[%s193 + $0x530] sm:$0xff]
      %v380 = vld [vmem:[%s193 + $0x538] sm:$0xff]
      %v381 = vld [vmem:[%s193 + $0x540] sm:$0xff]
      %v382 = vld [vmem:[%s193 + $0x548] sm:$0xff]
      %v383 = vld [vmem:[%s193 + $0x550] sm:$0xff]
      %v384 = vld [vmem:[%s193 + $0x558] sm:$0xff]
      %v385 = vld [vmem:[%s193 + $0x560] sm:$0xff]
      %v386 = vld [vmem:[%s193 + $0x568] sm:$0xff]
      %v387 = vld [vmem:[%s193 + $0x570] sm:$0xff]
      %v388 = vld [vmem:[%s193 + $0x578] sm:$0xff]
      %v389 = vld [vmem:[%s193 + $0x580] sm:$0xff]
      %v390 = vld [vmem:[%s193 + $0x588] sm:$0xff]
      %v391 = vld [vmem:[%s193 + $0x590] sm:$0xff]
      %v392 = vld [vmem:[%s193 + $0x598] sm:$0xff]
      %v393 = vld [vmem:[%s193 + $0x5a0] sm:$0xff]
      %v394 = vld [vmem:[%s193 + $0x5a8] sm:$0xff]
      %v395 = vld [vmem:[%s193 + $0x5b0] sm:$0xff]
      %v396 = vld [vmem:[%s193 + $0x5b8] sm:$0xff]
      %v397 = vld [vmem:[%s193 + $0x5c0] sm:$0xff]
      %v398 = vld [vmem:[%s193 + $0x5c8] sm:$0xff]
      %v399 = vld [vmem:[%s193 + $0x5d0] sm:$0xff]
      %v400 = vld [vmem:[%s193 + $0x5d8] sm:$0xff]
      %v401 = vld [vmem:[%s193 + $0x5e0] sm:$0xff]
      %v402 = vld [vmem:[%s193 + $0x5e8] sm:$0xff]
      %v403 = vld [vmem:[%s193 + $0x5f0] sm:$0xff]
      %v404 = vld [vmem:[%s193 + $0x5f8] sm:$0xff]
      %v405 = vld [vmem:[%s193 + $0x600] sm:$0xff]
      %v406 = vld [vmem:[%s193 + $0x608] sm:$0xff]
      %v407 = vld [vmem:[%s193 + $0x610] sm:$0xff]
      %v408 = vld [vmem:[%s193 + $0x618] sm:$0xff]
      %v409 = vld [vmem:[%s193 + $0x620] sm:$0xff]
      %v410 = vld [vmem:[%s193 + $0x628] sm:$0xff]
      %v411 = vld [vmem:[%s193 + $0x630] sm:$0xff]
      %v412 = vld [vmem:[%s193 + $0x638] sm:$0xff]
      %v413 = vld [vmem:[%s193 + $0x640] sm:$0xff]
      %v414 = vld [vmem:[%s193 + $0x648] sm:$0xff]
      %v415 = vld [vmem:[%s193 + $0x650] sm:$0xff]
      %v416 = vld [vmem:[%s193 + $0x658] sm:$0xff]
      %v417 = vld [vmem:[%s193 + $0x660] sm:$0xff]
      %v418 = vld [vmem:[%s193 + $0x668] sm:$0xff]
      %v419 = vld [vmem:[%s193 + $0x670] sm:$0xff]
      %v420 = vld [vmem:[%s193 + $0x678] sm:$0xff]
      %v421 = vld [vmem:[%s193 + $0x680] sm:$0xff]
      %v422 = vld [vmem:[%s193 + $0x688] sm:$0xff]
      %v423 = vld [vmem:[%s193 + $0x690] sm:$0xff]
      %v424 = vld [vmem:[%s193 + $0x698] sm:$0xff]
      %v425 = vld [vmem:[%s193 + $0x6a0] sm:$0xff]
      %v426 = vld [vmem:[%s193 + $0x6a8] sm:$0xff]
      %v427 = vld [vmem:[%s193 + $0x6b0] sm:$0xff]
      %v428 = vld [vmem:[%s193 + $0x6b8] sm:$0xff]
      %v429 = vld [vmem:[%s193 + $0x6c0] sm:$0xff]
      %v430 = vld [vmem:[%s193 + $0x6c8] sm:$0xff]
      %v431 = vld [vmem:[%s193 + $0x6d0] sm:$0xff]
      %v432 = vld [vmem:[%s193 + $0x6d8] sm:$0xff]
      %v433 = vld [vmem:[%s193 + $0x6e0] sm:$0xff]
      %v434 = vld [vmem:[%s193 + $0x6e8] sm:$0xff]
      %v435 = vld [vmem:[%s193 + $0x6f0] sm:$0xff]
      %v436 = vld [vmem:[%s193 + $0x6f8] sm:$0xff]
      %v437 = vld [vmem:[%s193 + $0x700] sm:$0xff]
      %v438 = vld [vmem:[%s193 + $0x708] sm:$0xff]
      %v439 = vld [vmem:[%s193 + $0x710] sm:$0xff]
      %v440 = vld [vmem:[%s193 + $0x718] sm:$0xff]
      %v441 = vld [vmem:[%s193 + $0x720] sm:$0xff]
      %v442 = vld [vmem:[%s193 + $0x728] sm:$0xff]
      %v443 = vld [vmem:[%s193 + $0x730] sm:$0xff]
      %v444 = vld [vmem:[%s193 + $0x738] sm:$0xff]
      %v445 = vld [vmem:[%s193 + $0x740] sm:$0xff]
      %v446 = vld [vmem:[%s193 + $0x748] sm:$0xff]
      %v447 = vld [vmem:[%s193 + $0x750] sm:$0xff]
      %v448 = vld [vmem:[%s193 + $0x758] sm:$0xff]
      %v449 = vld [vmem:[%s193 + $0x760] sm:$0xff]
      %v450 = vld [vmem:[%s193 + $0x768] sm:$0xff]
      %v451 = vld [vmem:[%s193 + $0x770] sm:$0xff]
      %v452 = vld [vmem:[%s193 + $0x778] sm:$0xff]
      %v453 = vld [vmem:[%s193 + $0x780] sm:$0xff]
      %v454 = vld [vmem:[%s193 + $0x788] sm:$0xff]
      %v455 = vld [vmem:[%s193 + $0x790] sm:$0xff]
      %v456 = vld [vmem:[%s193 + $0x798] sm:$0xff]
      %v457 = vld [vmem:[%s193 + $0x7a0] sm:$0xff]
      %v458 = vld [vmem:[%s193 + $0x7a8] sm:$0xff]
      %v459 = vld [vmem:[%s193 + $0x7b0] sm:$0xff]
      %v460 = vld [vmem:[%s193 + $0x7b8] sm:$0xff]
      %v461 = vld [vmem:[%s193 + $0x7c0] sm:$0xff]
      %v462 = vld [vmem:[%s193 + $0x7c8] sm:$0xff]
      %v463 = vld [vmem:[%s193 + $0x7d0] sm:$0xff]
      %v464 = vld [vmem:[%s193 + $0x7d8] sm:$0xff]
      %v465 = vld [vmem:[%s193 + $0x7e0] sm:$0xff]
      %v466 = vld [vmem:[%s193 + $0x7e8] sm:$0xff]
      %v467 = vld [vmem:[%s193 + $0x7f0] sm:$0xff]
      %v468 = vld [vmem:[%s193 + $0x7f8] sm:$0xff]
      %v469 = vld [vmem:[%s200] sm:$0xff]
      %v470 = vld [vmem:[%s200 + $0x8] sm:$0xff]
      %v471 = vld [vmem:[%s200 + $0x10] sm:$0xff]
      %v472 = vld [vmem:[%s200 + $0x18] sm:$0xff]
      %v473 = vld [vmem:[%s200 + $0x20] sm:$0xff]
      %v474 = vld [vmem:[%s200 + $0x28] sm:$0xff]
      %v475 = vld [vmem:[%s200 + $0x30] sm:$0xff]
      %v476 = vld [vmem:[%s200 + $0x38] sm:$0xff]
      %v477 = vld [vmem:[%s200 + $0x40] sm:$0xff]
      %v478 = vld [vmem:[%s200 + $0x48] sm:$0xff]
      %v479 = vld [vmem:[%s200 + $0x50] sm:$0xff]
      %v480 = vld [vmem:[%s200 + $0x58] sm:$0xff]
      %v481 = vld [vmem:[%s200 + $0x60] sm:$0xff]
      %v482 = vld [vmem:[%s200 + $0x68] sm:$0xff]
      %v483 = vld [vmem:[%s200 + $0x70] sm:$0xff]
      %v484 = vld [vmem:[%s200 + $0x78] sm:$0xff]
      %v485 = vld [vmem:[%s200 + $0x80] sm:$0xff]
      %v486 = vld [vmem:[%s200 + $0x88] sm:$0xff]
      %v487 = vld [vmem:[%s200 + $0x90] sm:$0xff]
      %v488 = vld [vmem:[%s200 + $0x98] sm:$0xff]
      %v489 = vld [vmem:[%s200 + $0xa0] sm:$0xff]
      %v490 = vld [vmem:[%s200 + $0xa8] sm:$0xff]
      %v491 = vld [vmem:[%s200 + $0xb0] sm:$0xff]
      %v492 = vld [vmem:[%s200 + $0xb8] sm:$0xff]
      %v493 = vld [vmem:[%s200 + $0xc0] sm:$0xff]
      %v494 = vld [vmem:[%s200 + $0xc8] sm:$0xff]
      %v495 = vld [vmem:[%s200 + $0xd0] sm:$0xff]
      %v496 = vld [vmem:[%s200 + $0xd8] sm:$0xff]
      %v497 = vld [vmem:[%s200 + $0xe0] sm:$0xff]
      %v498 = vld [vmem:[%s200 + $0xe8] sm:$0xff]
      %v499 = vld [vmem:[%s200 + $0xf0] sm:$0xff]
      %v500 = vld [vmem:[%s200 + $0xf8] sm:$0xff]
      %v501 = vld [vmem:[%s200 + $0x100] sm:$0xff]
      %v502 = vld [vmem:[%s200 + $0x108] sm:$0xff]
      %v503 = vld [vmem:[%s200 + $0x110] sm:$0xff]
      %v504 = vld [vmem:[%s200 + $0x118] sm:$0xff]
      %v505 = vld [vmem:[%s200 + $0x120] sm:$0xff]
      %v506 = vld [vmem:[%s200 + $0x128] sm:$0xff]
      %v507 = vld [vmem:[%s200 + $0x130] sm:$0xff]
      %v508 = vld [vmem:[%s200 + $0x138] sm:$0xff]
      %v509 = vld [vmem:[%s200 + $0x140] sm:$0xff]
      %v510 = vld [vmem:[%s200 + $0x148] sm:$0xff]
      %v511 = vld [vmem:[%s200 + $0x150] sm:$0xff]
      %v512 = vld [vmem:[%s200 + $0x158] sm:$0xff]
      %v513 = vld [vmem:[%s200 + $0x160] sm:$0xff]
      %v514 = vld [vmem:[%s200 + $0x168] sm:$0xff]
      %v515 = vld [vmem:[%s200 + $0x170] sm:$0xff]
      %v516 = vld [vmem:[%s200 + $0x178] sm:$0xff]
      %v517 = vld [vmem:[%s200 + $0x180] sm:$0xff]
      %v518 = vld [vmem:[%s200 + $0x188] sm:$0xff]
      %v519 = vld [vmem:[%s200 + $0x190] sm:$0xff]
      %v520 = vld [vmem:[%s200 + $0x198] sm:$0xff]
      %v521 = vld [vmem:[%s200 + $0x1a0] sm:$0xff]
      %v522 = vld [vmem:[%s200 + $0x1a8] sm:$0xff]
      %v523 = vld [vmem:[%s200 + $0x1b0] sm:$0xff]
      %v524 = vld [vmem:[%s200 + $0x1b8] sm:$0xff]
      %v525 = vld [vmem:[%s200 + $0x1c0] sm:$0xff]
      %v526 = vld [vmem:[%s200 + $0x1c8] sm:$0xff]
      %v527 = vld [vmem:[%s200 + $0x1d0] sm:$0xff]
      %v528 = vld [vmem:[%s200 + $0x1d8] sm:$0xff]
      %v529 = vld [vmem:[%s200 + $0x1e0] sm:$0xff]
      %v530 = vld [vmem:[%s200 + $0x1e8] sm:$0xff]
      %v531 = vld [vmem:[%s200 + $0x1f0] sm:$0xff]
      %v532 = vld [vmem:[%s200 + $0x1f8] sm:$0xff]
      %v533 = vld [vmem:[%s200 + $0x200] sm:$0xff]
      %v534 = vld [vmem:[%s200 + $0x208] sm:$0xff]
      %v535 = vld [vmem:[%s200 + $0x210] sm:$0xff]
      %v536 = vld [vmem:[%s200 + $0x218] sm:$0xff]
      %v537 = vld [vmem:[%s200 + $0x220] sm:$0xff]
      %v538 = vld [vmem:[%s200 + $0x228] sm:$0xff]
      %v539 = vld [vmem:[%s200 + $0x230] sm:$0xff]
      %v540 = vld [vmem:[%s200 + $0x238] sm:$0xff]
      %v541 = vld [vmem:[%s200 + $0x240] sm:$0xff]
      %v542 = vld [vmem:[%s200 + $0x248] sm:$0xff]
      %v543 = vld [vmem:[%s200 + $0x250] sm:$0xff]
      %v544 = vld [vmem:[%s200 + $0x258] sm:$0xff]
      %v545 = vld [vmem:[%s200 + $0x260] sm:$0xff]
      %v546 = vld [vmem:[%s200 + $0x268] sm:$0xff]
      %v547 = vld [vmem:[%s200 + $0x270] sm:$0xff]
      %v548 = vld [vmem:[%s200 + $0x278] sm:$0xff]
      %v549 = vld [vmem:[%s200 + $0x280] sm:$0xff]
      %v550 = vld [vmem:[%s200 + $0x288] sm:$0xff]
      %v551 = vld [vmem:[%s200 + $0x290] sm:$0xff]
      %v552 = vld [vmem:[%s200 + $0x298] sm:$0xff]
      %v553 = vld [vmem:[%s200 + $0x2a0] sm:$0xff]
      %v554 = vld [vmem:[%s200 + $0x2a8] sm:$0xff]
      %v555 = vld [vmem:[%s200 + $0x2b0] sm:$0xff]
      %v556 = vld [vmem:[%s200 + $0x2b8] sm:$0xff]
      %v557 = vld [vmem:[%s200 + $0x2c0] sm:$0xff]
      %v558 = vld [vmem:[%s200 + $0x2c8] sm:$0xff]
      %v559 = vld [vmem:[%s200 + $0x2d0] sm:$0xff]
      %v560 = vld [vmem:[%s200 + $0x2d8] sm:$0xff]
      %v561 = vld [vmem:[%s200 + $0x2e0] sm:$0xff]
      %v562 = vld [vmem:[%s200 + $0x2e8] sm:$0xff]
      %v563 = vld [vmem:[%s200 + $0x2f0] sm:$0xff]
      %v564 = vld [vmem:[%s200 + $0x2f8] sm:$0xff]
      %v565 = vld [vmem:[%s200 + $0x300] sm:$0xff]
      %v566 = vld [vmem:[%s200 + $0x308] sm:$0xff]
      %v567 = vld [vmem:[%s200 + $0x310] sm:$0xff]
      %v568 = vld [vmem:[%s200 + $0x318] sm:$0xff]
      %v569 = vld [vmem:[%s200 + $0x320] sm:$0xff]
      %v570 = vld [vmem:[%s200 + $0x328] sm:$0xff]
      %v571 = vld [vmem:[%s200 + $0x330] sm:$0xff]
      %v572 = vld [vmem:[%s200 + $0x338] sm:$0xff]
      %v573 = vld [vmem:[%s200 + $0x340] sm:$0xff]
      %v574 = vld [vmem:[%s200 + $0x348] sm:$0xff]
      %v575 = vld [vmem:[%s200 + $0x350] sm:$0xff]
      %v576 = vld [vmem:[%s200 + $0x358] sm:$0xff]
      %v577 = vld [vmem:[%s200 + $0x360] sm:$0xff]
      %v578 = vld [vmem:[%s200 + $0x368] sm:$0xff]
      %v579 = vld [vmem:[%s200 + $0x370] sm:$0xff]
      %v580 = vld [vmem:[%s200 + $0x378] sm:$0xff]
      %v581 = vld [vmem:[%s200 + $0x380] sm:$0xff]
      %v582 = vld [vmem:[%s200 + $0x388] sm:$0xff]
      %v583 = vld [vmem:[%s200 + $0x390] sm:$0xff]
      %v584 = vld [vmem:[%s200 + $0x398] sm:$0xff]
      %v585 = vld [vmem:[%s200 + $0x3a0] sm:$0xff]
      %v586 = vld [vmem:[%s200 + $0x3a8] sm:$0xff]
      %v587 = vld [vmem:[%s200 + $0x3b0] sm:$0xff]
      %v588 = vld [vmem:[%s200 + $0x3b8] sm:$0xff]
      %v589 = vld [vmem:[%s200 + $0x3c0] sm:$0xff]
      %v590 = vld [vmem:[%s200 + $0x3c8] sm:$0xff]
      %v591 = vld [vmem:[%s200 + $0x3d0] sm:$0xff]
      %v592 = vld [vmem:[%s200 + $0x3d8] sm:$0xff]
      %v593 = vld [vmem:[%s200 + $0x3e0] sm:$0xff]
      %v594 = vld [vmem:[%s200 + $0x3e8] sm:$0xff]
      %v595 = vld [vmem:[%s200 + $0x3f0] sm:$0xff]
      %v596 = vld [vmem:[%s200 + $0x3f8] sm:$0xff]
      %v597 = vld [vmem:[%s200 + $0x400] sm:$0xff]
      %v598 = vld [vmem:[%s200 + $0x408] sm:$0xff]
      %v599 = vld [vmem:[%s200 + $0x410] sm:$0xff]
      %v600 = vld [vmem:[%s200 + $0x418] sm:$0xff]
      %v601 = vld [vmem:[%s200 + $0x420] sm:$0xff]
      %v602 = vld [vmem:[%s200 + $0x428] sm:$0xff]
      %v603 = vld [vmem:[%s200 + $0x430] sm:$0xff]
      %v604 = vld [vmem:[%s200 + $0x438] sm:$0xff]
      %v605 = vld [vmem:[%s200 + $0x440] sm:$0xff]
      %v606 = vld [vmem:[%s200 + $0x448] sm:$0xff]
      %v607 = vld [vmem:[%s200 + $0x450] sm:$0xff]
      %v608 = vld [vmem:[%s200 + $0x458] sm:$0xff]
      %v609 = vld [vmem:[%s200 + $0x460] sm:$0xff]
      %v610 = vld [vmem:[%s200 + $0x468] sm:$0xff]
      %v611 = vld [vmem:[%s200 + $0x470] sm:$0xff]
      %v612 = vld [vmem:[%s200 + $0x478] sm:$0xff]
      %v613 = vld [vmem:[%s200 + $0x480] sm:$0xff]
      %v614 = vld [vmem:[%s200 + $0x488] sm:$0xff]
      %v615 = vld [vmem:[%s200 + $0x490] sm:$0xff]
      %v616 = vld [vmem:[%s200 + $0x498] sm:$0xff]
      %v617 = vld [vmem:[%s200 + $0x4a0] sm:$0xff]
      %v618 = vld [vmem:[%s200 + $0x4a8] sm:$0xff]
      %v619 = vld [vmem:[%s200 + $0x4b0] sm:$0xff]
      %v620 = vld [vmem:[%s200 + $0x4b8] sm:$0xff]
      %v621 = vld [vmem:[%s200 + $0x4c0] sm:$0xff]
      %v622 = vld [vmem:[%s200 + $0x4c8] sm:$0xff]
      %v623 = vld [vmem:[%s200 + $0x4d0] sm:$0xff]
      %v624 = vld [vmem:[%s200 + $0x4d8] sm:$0xff]
      %v625 = vld [vmem:[%s200 + $0x4e0] sm:$0xff]
      %v626 = vld [vmem:[%s200 + $0x4e8] sm:$0xff]
      %v627 = vld [vmem:[%s200 + $0x4f0] sm:$0xff]
      %v628 = vld [vmem:[%s200 + $0x4f8] sm:$0xff]
      %v629 = vld [vmem:[%s200 + $0x500] sm:$0xff]
      %v630 = vld [vmem:[%s200 + $0x508] sm:$0xff]
      %v631 = vld [vmem:[%s200 + $0x510] sm:$0xff]
      %v632 = vld [vmem:[%s200 + $0x518] sm:$0xff]
      %v633 = vld [vmem:[%s200 + $0x520] sm:$0xff]
      %v634 = vld [vmem:[%s200 + $0x528] sm:$0xff]
      %v635 = vld [vmem:[%s200 + $0x530] sm:$0xff]
      %v636 = vld [vmem:[%s200 + $0x538] sm:$0xff]
      %v637 = vld [vmem:[%s200 + $0x540] sm:$0xff]
      %v638 = vld [vmem:[%s200 + $0x548] sm:$0xff]
      %v639 = vld [vmem:[%s200 + $0x550] sm:$0xff]
      %v640 = vld [vmem:[%s200 + $0x558] sm:$0xff]
      %v641 = vld [vmem:[%s200 + $0x560] sm:$0xff]
      %v642 = vld [vmem:[%s200 + $0x568] sm:$0xff]
      %v643 = vld [vmem:[%s200 + $0x570] sm:$0xff]
      %v644 = vld [vmem:[%s200 + $0x578] sm:$0xff]
      %v645 = vld [vmem:[%s200 + $0x580] sm:$0xff]
      %v646 = vld [vmem:[%s200 + $0x588] sm:$0xff]
      %v647 = vld [vmem:[%s200 + $0x590] sm:$0xff]
      %v648 = vld [vmem:[%s200 + $0x598] sm:$0xff]
      %v649 = vld [vmem:[%s200 + $0x5a0] sm:$0xff]
      %v650 = vld [vmem:[%s200 + $0x5a8] sm:$0xff]
      %v651 = vld [vmem:[%s200 + $0x5b0] sm:$0xff]
      %v652 = vld [vmem:[%s200 + $0x5b8] sm:$0xff]
      %v653 = vld [vmem:[%s200 + $0x5c0] sm:$0xff]
      %v654 = vld [vmem:[%s200 + $0x5c8] sm:$0xff]
      %v655 = vld [vmem:[%s200 + $0x5d0] sm:$0xff]
      %v656 = vld [vmem:[%s200 + $0x5d8] sm:$0xff]
      %v657 = vld [vmem:[%s200 + $0x5e0] sm:$0xff]
      %v658 = vld [vmem:[%s200 + $0x5e8] sm:$0xff]
      %v659 = vld [vmem:[%s200 + $0x5f0] sm:$0xff]
      %v660 = vld [vmem:[%s200 + $0x5f8] sm:$0xff]
      %v661 = vld [vmem:[%s200 + $0x600] sm:$0xff]
      %v662 = vld [vmem:[%s200 + $0x608] sm:$0xff]
      %v663 = vld [vmem:[%s200 + $0x610] sm:$0xff]
      %v664 = vld [vmem:[%s200 + $0x618] sm:$0xff]
      %v665 = vld [vmem:[%s200 + $0x620] sm:$0xff]
      %v666 = vld [vmem:[%s200 + $0x628] sm:$0xff]
      %v667 = vld [vmem:[%s200 + $0x630] sm:$0xff]
      %v668 = vld [vmem:[%s200 + $0x638] sm:$0xff]
      %v669 = vld [vmem:[%s200 + $0x640] sm:$0xff]
      %v670 = vld [vmem:[%s200 + $0x648] sm:$0xff]
      %v671 = vld [vmem:[%s200 + $0x650] sm:$0xff]
      %v672 = vld [vmem:[%s200 + $0x658] sm:$0xff]
      %v673 = vld [vmem:[%s200 + $0x660] sm:$0xff]
      %v674 = vld [vmem:[%s200 + $0x668] sm:$0xff]
      %v675 = vld [vmem:[%s200 + $0x670] sm:$0xff]
      %v676 = vld [vmem:[%s200 + $0x678] sm:$0xff]
      %v677 = vld [vmem:[%s200 + $0x680] sm:$0xff]
      %v678 = vld [vmem:[%s200 + $0x688] sm:$0xff]
      %v679 = vld [vmem:[%s200 + $0x690] sm:$0xff]
      %v680 = vld [vmem:[%s200 + $0x698] sm:$0xff]
      %v681 = vld [vmem:[%s200 + $0x6a0] sm:$0xff]
      %v682 = vld [vmem:[%s200 + $0x6a8] sm:$0xff]
      %v683 = vld [vmem:[%s200 + $0x6b0] sm:$0xff]
      %v684 = vld [vmem:[%s200 + $0x6b8] sm:$0xff]
      %v685 = vld [vmem:[%s200 + $0x6c0] sm:$0xff]
      %v686 = vld [vmem:[%s200 + $0x6c8] sm:$0xff]
      %v687 = vld [vmem:[%s200 + $0x6d0] sm:$0xff]
      %v688 = vld [vmem:[%s200 + $0x6d8] sm:$0xff]
      %v689 = vld [vmem:[%s200 + $0x6e0] sm:$0xff]
      %v690 = vld [vmem:[%s200 + $0x6e8] sm:$0xff]
      %v691 = vld [vmem:[%s200 + $0x6f0] sm:$0xff]
      %v692 = vld [vmem:[%s200 + $0x6f8] sm:$0xff]
      %v693 = vld [vmem:[%s200 + $0x700] sm:$0xff]
      %v694 = vld [vmem:[%s200 + $0x708] sm:$0xff]
      %v695 = vld [vmem:[%s200 + $0x710] sm:$0xff]
      %v696 = vld [vmem:[%s200 + $0x718] sm:$0xff]
      %v697 = vld [vmem:[%s200 + $0x720] sm:$0xff]
      %v698 = vld [vmem:[%s200 + $0x728] sm:$0xff]
      %v699 = vld [vmem:[%s200 + $0x730] sm:$0xff]
      %v700 = vld [vmem:[%s200 + $0x738] sm:$0xff]
      %v701 = vld [vmem:[%s200 + $0x740] sm:$0xff]
      %v702 = vld [vmem:[%s200 + $0x748] sm:$0xff]
      %v703 = vld [vmem:[%s200 + $0x750] sm:$0xff]
      %v704 = vld [vmem:[%s200 + $0x758] sm:$0xff]
      %v705 = vld [vmem:[%s200 + $0x760] sm:$0xff]
      %v706 = vld [vmem:[%s200 + $0x768] sm:$0xff]
      %v707 = vld [vmem:[%s200 + $0x770] sm:$0xff]
      %v708 = vld [vmem:[%s200 + $0x778] sm:$0xff]
      %v709 = vld [vmem:[%s200 + $0x780] sm:$0xff]
      %v710 = vld [vmem:[%s200 + $0x788] sm:$0xff]
      %v711 = vld [vmem:[%s200 + $0x790] sm:$0xff]
      %v712 = vld [vmem:[%s200 + $0x798] sm:$0xff]
      %v713 = vld [vmem:[%s200 + $0x7a0] sm:$0xff]
      %v714 = vld [vmem:[%s200 + $0x7a8] sm:$0xff]
      %v715 = vld [vmem:[%s200 + $0x7b0] sm:$0xff]
      %v716 = vld [vmem:[%s200 + $0x7b8] sm:$0xff]
      %v717 = vld [vmem:[%s200 + $0x7c0] sm:$0xff]
      %v718 = vld [vmem:[%s200 + $0x7c8] sm:$0xff]
      %v719 = vld [vmem:[%s200 + $0x7d0] sm:$0xff]
      %v720 = vld [vmem:[%s200 + $0x7d8] sm:$0xff]
      %v721 = vld [vmem:[%s200 + $0x7e0] sm:$0xff]
      %v722 = vld [vmem:[%s200 + $0x7e8] sm:$0xff]
      %v723 = vld [vmem:[%s200 + $0x7f0] sm:$0xff]
      %v724 = vld [vmem:[%s200 + $0x7f8] sm:$0xff]
      %v725 = vadd.f32 %v213, %v469
      %v726 = vadd.f32 %v214, %v470
      %v727 = vadd.f32 %v215, %v471
      %v728 = vadd.f32 %v216, %v472
      %v729 = vadd.f32 %v217, %v473
      %v730 = vadd.f32 %v218, %v474
      %v731 = vadd.f32 %v219, %v475
      %v732 = vadd.f32 %v220, %v476
      %v733 = vadd.f32 %v221, %v477
      %v734 = vadd.f32 %v222, %v478
      %v735 = vadd.f32 %v223, %v479
      %v736 = vadd.f32 %v224, %v480
      %v737 = vadd.f32 %v225, %v481
      %v738 = vadd.f32 %v226, %v482
      %v739 = vadd.f32 %v227, %v483
      %v740 = vadd.f32 %v228, %v484
      %v741 = vadd.f32 %v229, %v485
      %v742 = vadd.f32 %v230, %v486
      %v743 = vadd.f32 %v231, %v487
      %v744 = vadd.f32 %v232, %v488
      %v745 = vadd.f32 %v233, %v489
      %v746 = vadd.f32 %v234, %v490
      %v747 = vadd.f32 %v235, %v491
      %v748 = vadd.f32 %v236, %v492
      %v749 = vadd.f32 %v237, %v493
      %v750 = vadd.f32 %v238, %v494
      %v751 = vadd.f32 %v239, %v495
      %v752 = vadd.f32 %v240, %v496
      %v753 = vadd.f32 %v241, %v497
      %v754 = vadd.f32 %v242, %v498
      %v755 = vadd.f32 %v243, %v499
      %v756 = vadd.f32 %v244, %v500
      %v757 = vadd.f32 %v245, %v501
      %v758 = vadd.f32 %v246, %v502
      %v759 = vadd.f32 %v247, %v503
      %v760 = vadd.f32 %v248, %v504
      %v761 = vadd.f32 %v249, %v505
      %v762 = vadd.f32 %v250, %v506
      %v763 = vadd.f32 %v251, %v507
      %v764 = vadd.f32 %v252, %v508
      %v765 = vadd.f32 %v253, %v509
      %v766 = vadd.f32 %v254, %v510
      %v767 = vadd.f32 %v255, %v511
      %v768 = vadd.f32 %v256, %v512
      %v769 = vadd.f32 %v257, %v513
      %v770 = vadd.f32 %v258, %v514
      %v771 = vadd.f32 %v259, %v515
      %v772 = vadd.f32 %v260, %v516
      %v773 = vadd.f32 %v261, %v517
      %v774 = vadd.f32 %v262, %v518
      %v775 = vadd.f32 %v263, %v519
      %v776 = vadd.f32 %v264, %v520
      %v777 = vadd.f32 %v265, %v521
      %v778 = vadd.f32 %v266, %v522
      %v779 = vadd.f32 %v267, %v523
      %v780 = vadd.f32 %v268, %v524
      %v781 = vadd.f32 %v269, %v525
      %v782 = vadd.f32 %v270, %v526
      %v783 = vadd.f32 %v271, %v527
      %v784 = vadd.f32 %v272, %v528
      %v785 = vadd.f32 %v273, %v529
      %v786 = vadd.f32 %v274, %v530
      %v787 = vadd.f32 %v275, %v531
      %v788 = vadd.f32 %v276, %v532
      %v789 = vadd.f32 %v277, %v533
      %v790 = vadd.f32 %v278, %v534
      %v791 = vadd.f32 %v279, %v535
      %v792 = vadd.f32 %v280, %v536
      %v793 = vadd.f32 %v281, %v537
      %v794 = vadd.f32 %v282, %v538
      %v795 = vadd.f32 %v283, %v539
      %v796 = vadd.f32 %v284, %v540
      %v797 = vadd.f32 %v285, %v541
      %v798 = vadd.f32 %v286, %v542
      %v799 = vadd.f32 %v287, %v543
      %v800 = vadd.f32 %v288, %v544
      %v801 = vadd.f32 %v289, %v545
      %v802 = vadd.f32 %v290, %v546
      %v803 = vadd.f32 %v291, %v547
      %v804 = vadd.f32 %v292, %v548
      %v805 = vadd.f32 %v293, %v549
      %v806 = vadd.f32 %v294, %v550
      %v807 = vadd.f32 %v295, %v551
      %v808 = vadd.f32 %v296, %v552
      %v809 = vadd.f32 %v297, %v553
      %v810 = vadd.f32 %v298, %v554
      %v811 = vadd.f32 %v299, %v555
      %v812 = vadd.f32 %v300, %v556
      %v813 = vadd.f32 %v301, %v557
      %v814 = vadd.f32 %v302, %v558
      %v815 = vadd.f32 %v303, %v559
      %v816 = vadd.f32 %v304, %v560
      %v817 = vadd.f32 %v305, %v561
      %v818 = vadd.f32 %v306, %v562
      %v819 = vadd.f32 %v307, %v563
      %v820 = vadd.f32 %v308, %v564
      %v821 = vadd.f32 %v309, %v565
      %v822 = vadd.f32 %v310, %v566
      %v823 = vadd.f32 %v311, %v567
      %v824 = vadd.f32 %v312, %v568
      %v825 = vadd.f32 %v313, %v569
      %v826 = vadd.f32 %v314, %v570
      %v827 = vadd.f32 %v315, %v571
      %v828 = vadd.f32 %v316, %v572
      %v829 = vadd.f32 %v317, %v573
      %v830 = vadd.f32 %v318, %v574
      %v831 = vadd.f32 %v319, %v575
      %v832 = vadd.f32 %v320, %v576
      %v833 = vadd.f32 %v321, %v577
      %v834 = vadd.f32 %v322, %v578
      %v835 = vadd.f32 %v323, %v579
      %v836 = vadd.f32 %v324, %v580
      %v837 = vadd.f32 %v325, %v581
      %v838 = vadd.f32 %v326, %v582
      %v839 = vadd.f32 %v327, %v583
      %v840 = vadd.f32 %v328, %v584
      %v841 = vadd.f32 %v329, %v585
      %v842 = vadd.f32 %v330, %v586
      %v843 = vadd.f32 %v331, %v587
      %v844 = vadd.f32 %v332, %v588
      %v845 = vadd.f32 %v333, %v589
      %v846 = vadd.f32 %v334, %v590
      %v847 = vadd.f32 %v335, %v591
      %v848 = vadd.f32 %v336, %v592
      %v849 = vadd.f32 %v337, %v593
      %v850 = vadd.f32 %v338, %v594
      %v851 = vadd.f32 %v339, %v595
      %v852 = vadd.f32 %v340, %v596
      %v853 = vadd.f32 %v341, %v597
      %v854 = vadd.f32 %v342, %v598
      %v855 = vadd.f32 %v343, %v599
      %v856 = vadd.f32 %v344, %v600
      %v857 = vadd.f32 %v345, %v601
      %v858 = vadd.f32 %v346, %v602
      %v859 = vadd.f32 %v347, %v603
      %v860 = vadd.f32 %v348, %v604
      %v861 = vadd.f32 %v349, %v605
      %v862 = vadd.f32 %v350, %v606
      %v863 = vadd.f32 %v351, %v607
      %v864 = vadd.f32 %v352, %v608
      %v865 = vadd.f32 %v353, %v609
      %v866 = vadd.f32 %v354, %v610
      %v867 = vadd.f32 %v355, %v611
      %v868 = vadd.f32 %v356, %v612
      %v869 = vadd.f32 %v357, %v613
      %v870 = vadd.f32 %v358, %v614
      %v871 = vadd.f32 %v359, %v615
      %v872 = vadd.f32 %v360, %v616
      %v873 = vadd.f32 %v361, %v617
      %v874 = vadd.f32 %v362, %v618
      %v875 = vadd.f32 %v363, %v619
      %v876 = vadd.f32 %v364, %v620
      %v877 = vadd.f32 %v365, %v621
      %v878 = vadd.f32 %v366, %v622
      %v879 = vadd.f32 %v367, %v623
      %v880 = vadd.f32 %v368, %v624
      %v881 = vadd.f32 %v369, %v625
      %v882 = vadd.f32 %v370, %v626
      %v883 = vadd.f32 %v371, %v627
      %v884 = vadd.f32 %v372, %v628
      %v885 = vadd.f32 %v373, %v629
      %v886 = vadd.f32 %v374, %v630
      %v887 = vadd.f32 %v375, %v631
      %v888 = vadd.f32 %v376, %v632
      %v889 = vadd.f32 %v377, %v633
      %v890 = vadd.f32 %v378, %v634
      %v891 = vadd.f32 %v379, %v635
      %v892 = vadd.f32 %v380, %v636
      %v893 = vadd.f32 %v381, %v637
      %v894 = vadd.f32 %v382, %v638
      %v895 = vadd.f32 %v383, %v639
      %v896 = vadd.f32 %v384, %v640
      %v897 = vadd.f32 %v385, %v641
      %v898 = vadd.f32 %v386, %v642
      %v899 = vadd.f32 %v387, %v643
      %v900 = vadd.f32 %v388, %v644
      %v901 = vadd.f32 %v389, %v645
      %v902 = vadd.f32 %v390, %v646
      %v903 = vadd.f32 %v391, %v647
      %v904 = vadd.f32 %v392, %v648
      %v905 = vadd.f32 %v393, %v649
      %v906 = vadd.f32 %v394, %v650
      %v907 = vadd.f32 %v395, %v651
      %v908 = vadd.f32 %v396, %v652
      %v909 = vadd.f32 %v397, %v653
      %v910 = vadd.f32 %v398, %v654
      %v911 = vadd.f32 %v399, %v655
      %v912 = vadd.f32 %v400, %v656
      %v913 = vadd.f32 %v401, %v657
      %v914 = vadd.f32 %v402, %v658
      %v915 = vadd.f32 %v403, %v659
      %v916 = vadd.f32 %v404, %v660
      %v917 = vadd.f32 %v405, %v661
      %v918 = vadd.f32 %v406, %v662
      %v919 = vadd.f32 %v407, %v663
      %v920 = vadd.f32 %v408, %v664
      %v921 = vadd.f32 %v409, %v665
      %v922 = vadd.f32 %v410, %v666
      %v923 = vadd.f32 %v411, %v667
      %v924 = vadd.f32 %v412, %v668
      %v925 = vadd.f32 %v413, %v669
      %v926 = vadd.f32 %v414, %v670
      %v927 = vadd.f32 %v415, %v671
      %v928 = vadd.f32 %v416, %v672
      %v929 = vadd.f32 %v417, %v673
      %v930 = vadd.f32 %v418, %v674
      %v931 = vadd.f32 %v419, %v675
      %v932 = vadd.f32 %v420, %v676
      %v933 = vadd.f32 %v421, %v677
      %v934 = vadd.f32 %v422, %v678
      %v935 = vadd.f32 %v423, %v679
      %v936 = vadd.f32 %v424, %v680
      %v937 = vadd.f32 %v425, %v681
      %v938 = vadd.f32 %v426, %v682
      %v939 = vadd.f32 %v427, %v683
      %v940 = vadd.f32 %v428, %v684
      %v941 = vadd.f32 %v429, %v685
      %v942 = vadd.f32 %v430, %v686
      %v943 = vadd.f32 %v431, %v687
      %v944 = vadd.f32 %v432, %v688
      %v945 = vadd.f32 %v433, %v689
      %v946 = vadd.f32 %v434, %v690
      %v947 = vadd.f32 %v435, %v691
      %v948 = vadd.f32 %v436, %v692
      %v949 = vadd.f32 %v437, %v693
      %v950 = vadd.f32 %v438, %v694
      %v951 = vadd.f32 %v439, %v695
      %v952 = vadd.f32 %v440, %v696
      %v953 = vadd.f32 %v441, %v697
      %v954 = vadd.f32 %v442, %v698
      %v955 = vadd.f32 %v443, %v699
      %v956 = vadd.f32 %v444, %v700
      %v957 = vadd.f32 %v445, %v701
      %v958 = vadd.f32 %v446, %v702
      %v959 = vadd.f32 %v447, %v703
      %v960 = vadd.f32 %v448, %v704
      %v961 = vadd.f32 %v449, %v705
      %v962 = vadd.f32 %v450, %v706
      %v963 = vadd.f32 %v451, %v707
      %v964 = vadd.f32 %v452, %v708
      %v965 = vadd.f32 %v453, %v709
      %v966 = vadd.f32 %v454, %v710
      %v967 = vadd.f32 %v455, %v711
      %v968 = vadd.f32 %v456, %v712
      %v969 = vadd.f32 %v457, %v713
      %v970 = vadd.f32 %v458, %v714
      %v971 = vadd.f32 %v459, %v715
      %v972 = vadd.f32 %v460, %v716
      %v973 = vadd.f32 %v461, %v717
      %v974 = vadd.f32 %v462, %v718
      %v975 = vadd.f32 %v463, %v719
      %v976 = vadd.f32 %v464, %v720
      %v977 = vadd.f32 %v465, %v721
      %v978 = vadd.f32 %v466, %v722
      %v979 = vadd.f32 %v467, %v723
      %v980 = vadd.f32 %v468, %v724
      %981 = vst [vmem:[%s211] sm:$0xff] %v725
      %982 = vst [vmem:[%s211 + $0x8] sm:$0xff] %v726
      %983 = vst [vmem:[%s211 + $0x10] sm:$0xff] %v727
      %984 = vst [vmem:[%s211 + $0x18] sm:$0xff] %v728
      %985 = vst [vmem:[%s211 + $0x20] sm:$0xff] %v729
      %986 = vst [vmem:[%s211 + $0x28] sm:$0xff] %v730
      %987 = vst [vmem:[%s211 + $0x30] sm:$0xff] %v731
      %988 = vst [vmem:[%s211 + $0x38] sm:$0xff] %v732
      %989 = vst [vmem:[%s211 + $0x40] sm:$0xff] %v733
      %990 = vst [vmem:[%s211 + $0x48] sm:$0xff] %v734
      %991 = vst [vmem:[%s211 + $0x50] sm:$0xff] %v735
      %992 = vst [vmem:[%s211 + $0x58] sm:$0xff] %v736
      %993 = vst [vmem:[%s211 + $0x60] sm:$0xff] %v737
      %994 = vst [vmem:[%s211 + $0x68] sm:$0xff] %v738
      %995 = vst [vmem:[%s211 + $0x70] sm:$0xff] %v739
      %996 = vst [vmem:[%s211 + $0x78] sm:$0xff] %v740
      %997 = vst [vmem:[%s211 + $0x80] sm:$0xff] %v741
      %998 = vst [vmem:[%s211 + $0x88] sm:$0xff] %v742
      %999 = vst [vmem:[%s211 + $0x90] sm:$0xff] %v743
      %1000 = vst [vmem:[%s211 + $0x98] sm:$0xff] %v744
      %1001 = vst [vmem:[%s211 + $0xa0] sm:$0xff] %v745
      %1002 = vst [vmem:[%s211 + $0xa8] sm:$0xff] %v746
      %1003 = vst [vmem:[%s211 + $0xb0] sm:$0xff] %v747
      %1004 = vst [vmem:[%s211 + $0xb8] sm:$0xff] %v748
      %1005 = vst [vmem:[%s211 + $0xc0] sm:$0xff] %v749
      %1006 = vst [vmem:[%s211 + $0xc8] sm:$0xff] %v750
      %1007 = vst [vmem:[%s211 + $0xd0] sm:$0xff] %v751
      %1008 = vst [vmem:[%s211 + $0xd8] sm:$0xff] %v752
      %1009 = vst [vmem:[%s211 + $0xe0] sm:$0xff] %v753
      %1010 = vst [vmem:[%s211 + $0xe8] sm:$0xff] %v754
      %1011 = vst [vmem:[%s211 + $0xf0] sm:$0xff] %v755
      %1012 = vst [vmem:[%s211 + $0xf8] sm:$0xff] %v756
      %1013 = vst [vmem:[%s211 + $0x100] sm:$0xff] %v757
      %1014 = vst [vmem:[%s211 + $0x108] sm:$0xff] %v758
      %1015 = vst [vmem:[%s211 + $0x110] sm:$0xff] %v759
      %1016 = vst [vmem:[%s211 + $0x118] sm:$0xff] %v760
      %1017 = vst [vmem:[%s211 + $0x120] sm:$0xff] %v761
      %1018 = vst [vmem:[%s211 + $0x128] sm:$0xff] %v762
      %1019 = vst [vmem:[%s211 + $0x130] sm:$0xff] %v763
      %1020 = vst [vmem:[%s211 + $0x138] sm:$0xff] %v764
      %1021 = vst [vmem:[%s211 + $0x140] sm:$0xff] %v765
      %1022 = vst [vmem:[%s211 + $0x148] sm:$0xff] %v766
      %1023 = vst [vmem:[%s211 + $0x150] sm:$0xff] %v767
      %1024 = vst [vmem:[%s211 + $0x158] sm:$0xff] %v768
      %1025 = vst [vmem:[%s211 + $0x160] sm:$0xff] %v769
      %1026 = vst [vmem:[%s211 + $0x168] sm:$0xff] %v770
      %1027 = vst [vmem:[%s211 + $0x170] sm:$0xff] %v771
      %1028 = vst [vmem:[%s211 + $0x178] sm:$0xff] %v772
      %1029 = vst [vmem:[%s211 + $0x180] sm:$0xff] %v773
      %1030 = vst [vmem:[%s211 + $0x188] sm:$0xff] %v774
      %1031 = vst [vmem:[%s211 + $0x190] sm:$0xff] %v775
      %1032 = vst [vmem:[%s211 + $0x198] sm:$0xff] %v776
      %1033 = vst [vmem:[%s211 + $0x1a0] sm:$0xff] %v777
      %1034 = vst [vmem:[%s211 + $0x1a8] sm:$0xff] %v778
      %1035 = vst [vmem:[%s211 + $0x1b0] sm:$0xff] %v779
      %1036 = vst [vmem:[%s211 + $0x1b8] sm:$0xff] %v780
      %1037 = vst [vmem:[%s211 + $0x1c0] sm:$0xff] %v781
      %1038 = vst [vmem:[%s211 + $0x1c8] sm:$0xff] %v782
      %1039 = vst [vmem:[%s211 + $0x1d0] sm:$0xff] %v783
      %1040 = vst [vmem:[%s211 + $0x1d8] sm:$0xff] %v784
      %1041 = vst [vmem:[%s211 + $0x1e0] sm:$0xff] %v785
      %1042 = vst [vmem:[%s211 + $0x1e8] sm:$0xff] %v786
      %1043 = vst [vmem:[%s211 + $0x1f0] sm:$0xff] %v787
      %1044 = vst [vmem:[%s211 + $0x1f8] sm:$0xff] %v788
      %1045 = vst [vmem:[%s211 + $0x200] sm:$0xff] %v789
      %1046 = vst [vmem:[%s211 + $0x208] sm:$0xff] %v790
      %1047 = vst [vmem:[%s211 + $0x210] sm:$0xff] %v791
      %1048 = vst [vmem:[%s211 + $0x218] sm:$0xff] %v792
      %1049 = vst [vmem:[%s211 + $0x220] sm:$0xff] %v793
      %1050 = vst [vmem:[%s211 + $0x228] sm:$0xff] %v794
      %1051 = vst [vmem:[%s211 + $0x230] sm:$0xff] %v795
      %1052 = vst [vmem:[%s211 + $0x238] sm:$0xff] %v796
      %1053 = vst [vmem:[%s211 + $0x240] sm:$0xff] %v797
      %1054 = vst [vmem:[%s211 + $0x248] sm:$0xff] %v798
      %1055 = vst [vmem:[%s211 + $0x250] sm:$0xff] %v799
      %1056 = vst [vmem:[%s211 + $0x258] sm:$0xff] %v800
      %1057 = vst [vmem:[%s211 + $0x260] sm:$0xff] %v801
      %1058 = vst [vmem:[%s211 + $0x268] sm:$0xff] %v802
      %1059 = vst [vmem:[%s211 + $0x270] sm:$0xff] %v803
      %1060 = vst [vmem:[%s211 + $0x278] sm:$0xff] %v804
      %1061 = vst [vmem:[%s211 + $0x280] sm:$0xff] %v805
      %1062 = vst [vmem:[%s211 + $0x288] sm:$0xff] %v806
      %1063 = vst [vmem:[%s211 + $0x290] sm:$0xff] %v807
      %1064 = vst [vmem:[%s211 + $0x298] sm:$0xff] %v808
      %1065 = vst [vmem:[%s211 + $0x2a0] sm:$0xff] %v809
      %1066 = vst [vmem:[%s211 + $0x2a8] sm:$0xff] %v810
      %1067 = vst [vmem:[%s211 + $0x2b0] sm:$0xff] %v811
      %1068 = vst [vmem:[%s211 + $0x2b8] sm:$0xff] %v812
      %1069 = vst [vmem:[%s211 + $0x2c0] sm:$0xff] %v813
      %1070 = vst [vmem:[%s211 + $0x2c8] sm:$0xff] %v814
      %1071 = vst [vmem:[%s211 + $0x2d0] sm:$0xff] %v815
      %1072 = vst [vmem:[%s211 + $0x2d8] sm:$0xff] %v816
      %1073 = vst [vmem:[%s211 + $0x2e0] sm:$0xff] %v817
      %1074 = vst [vmem:[%s211 + $0x2e8] sm:$0xff] %v818
      %1075 = vst [vmem:[%s211 + $0x2f0] sm:$0xff] %v819
      %1076 = vst [vmem:[%s211 + $0x2f8] sm:$0xff] %v820
      %1077 = vst [vmem:[%s211 + $0x300] sm:$0xff] %v821
      %1078 = vst [vmem:[%s211 + $0x308] sm:$0xff] %v822
      %1079 = vst [vmem:[%s211 + $0x310] sm:$0xff] %v823
      %1080 = vst [vmem:[%s211 + $0x318] sm:$0xff] %v824
      %1081 = vst [vmem:[%s211 + $0x320] sm:$0xff] %v825
      %1082 = vst [vmem:[%s211 + $0x328] sm:$0xff] %v826
      %1083 = vst [vmem:[%s211 + $0x330] sm:$0xff] %v827
      %1084 = vst [vmem:[%s211 + $0x338] sm:$0xff] %v828
      %1085 = vst [vmem:[%s211 + $0x340] sm:$0xff] %v829
      %1086 = vst [vmem:[%s211 + $0x348] sm:$0xff] %v830
      %1087 = vst [vmem:[%s211 + $0x350] sm:$0xff] %v831
      %1088 = vst [vmem:[%s211 + $0x358] sm:$0xff] %v832
      %1089 = vst [vmem:[%s211 + $0x360] sm:$0xff] %v833
      %1090 = vst [vmem:[%s211 + $0x368] sm:$0xff] %v834
      %1091 = vst [vmem:[%s211 + $0x370] sm:$0xff] %v835
      %1092 = vst [vmem:[%s211 + $0x378] sm:$0xff] %v836
      %1093 = vst [vmem:[%s211 + $0x380] sm:$0xff] %v837
      %1094 = vst [vmem:[%s211 + $0x388] sm:$0xff] %v838
      %1095 = vst [vmem:[%s211 + $0x390] sm:$0xff] %v839
      %1096 = vst [vmem:[%s211 + $0x398] sm:$0xff] %v840
      %1097 = vst [vmem:[%s211 + $0x3a0] sm:$0xff] %v841
      %1098 = vst [vmem:[%s211 + $0x3a8] sm:$0xff] %v842
      %1099 = vst [vmem:[%s211 + $0x3b0] sm:$0xff] %v843
      %1100 = vst [vmem:[%s211 + $0x3b8] sm:$0xff] %v844
      %1101 = vst [vmem:[%s211 + $0x3c0] sm:$0xff] %v845
      %1102 = vst [vmem:[%s211 + $0x3c8] sm:$0xff] %v846
      %1103 = vst [vmem:[%s211 + $0x3d0] sm:$0xff] %v847
      %1104 = vst [vmem:[%s211 + $0x3d8] sm:$0xff] %v848
      %1105 = vst [vmem:[%s211 + $0x3e0] sm:$0xff] %v849
      %1106 = vst [vmem:[%s211 + $0x3e8] sm:$0xff] %v850
      %1107 = vst [vmem:[%s211 + $0x3f0] sm:$0xff] %v851
      %1108 = vst [vmem:[%s211 + $0x3f8] sm:$0xff] %v852
      %1109 = vst [vmem:[%s211 + $0x400] sm:$0xff] %v853
      %1110 = vst [vmem:[%s211 + $0x408] sm:$0xff] %v854
      %1111 = vst [vmem:[%s211 + $0x410] sm:$0xff] %v855
      %1112 = vst [vmem:[%s211 + $0x418] sm:$0xff] %v856
      %1113 = vst [vmem:[%s211 + $0x420] sm:$0xff] %v857
      %1114 = vst [vmem:[%s211 + $0x428] sm:$0xff] %v858
      %1115 = vst [vmem:[%s211 + $0x430] sm:$0xff] %v859
      %1116 = vst [vmem:[%s211 + $0x438] sm:$0xff] %v860
      %1117 = vst [vmem:[%s211 + $0x440] sm:$0xff] %v861
      %1118 = vst [vmem:[%s211 + $0x448] sm:$0xff] %v862
      %1119 = vst [vmem:[%s211 + $0x450] sm:$0xff] %v863
      %1120 = vst [vmem:[%s211 + $0x458] sm:$0xff] %v864
      %1121 = vst [vmem:[%s211 + $0x460] sm:$0xff] %v865
      %1122 = vst [vmem:[%s211 + $0x468] sm:$0xff] %v866
      %1123 = vst [vmem:[%s211 + $0x470] sm:$0xff] %v867
      %1124 = vst [vmem:[%s211 + $0x478] sm:$0xff] %v868
      %1125 = vst [vmem:[%s211 + $0x480] sm:$0xff] %v869
      %1126 = vst [vmem:[%s211 + $0x488] sm:$0xff] %v870
      %1127 = vst [vmem:[%s211 + $0x490] sm:$0xff] %v871
      %1128 = vst [vmem:[%s211 + $0x498] sm:$0xff] %v872
      %1129 = vst [vmem:[%s211 + $0x4a0] sm:$0xff] %v873
      %1130 = vst [vmem:[%s211 + $0x4a8] sm:$0xff] %v874
      %1131 = vst [vmem:[%s211 + $0x4b0] sm:$0xff] %v875
      %1132 = vst [vmem:[%s211 + $0x4b8] sm:$0xff] %v876
      %1133 = vst [vmem:[%s211 + $0x4c0] sm:$0xff] %v877
      %1134 = vst [vmem:[%s211 + $0x4c8] sm:$0xff] %v878
      %1135 = vst [vmem:[%s211 + $0x4d0] sm:$0xff] %v879
      %1136 = vst [vmem:[%s211 + $0x4d8] sm:$0xff] %v880
      %1137 = vst [vmem:[%s211 + $0x4e0] sm:$0xff] %v881
      %1138 = vst [vmem:[%s211 + $0x4e8] sm:$0xff] %v882
      %1139 = vst [vmem:[%s211 + $0x4f0] sm:$0xff] %v883
      %1140 = vst [vmem:[%s211 + $0x4f8] sm:$0xff] %v884
      %1141 = vst [vmem:[%s211 + $0x500] sm:$0xff] %v885
      %1142 = vst [vmem:[%s211 + $0x508] sm:$0xff] %v886
      %1143 = vst [vmem:[%s211 + $0x510] sm:$0xff] %v887
      %1144 = vst [vmem:[%s211 + $0x518] sm:$0xff] %v888
      %1145 = vst [vmem:[%s211 + $0x520] sm:$0xff] %v889
      %1146 = vst [vmem:[%s211 + $0x528] sm:$0xff] %v890
      %1147 = vst [vmem:[%s211 + $0x530] sm:$0xff] %v891
      %1148 = vst [vmem:[%s211 + $0x538] sm:$0xff] %v892
      %1149 = vst [vmem:[%s211 + $0x540] sm:$0xff] %v893
      %1150 = vst [vmem:[%s211 + $0x548] sm:$0xff] %v894
      %1151 = vst [vmem:[%s211 + $0x550] sm:$0xff] %v895
      %1152 = vst [vmem:[%s211 + $0x558] sm:$0xff] %v896
      %1153 = vst [vmem:[%s211 + $0x560] sm:$0xff] %v897
      %1154 = vst [vmem:[%s211 + $0x568] sm:$0xff] %v898
      %1155 = vst [vmem:[%s211 + $0x570] sm:$0xff] %v899
      %1156 = vst [vmem:[%s211 + $0x578] sm:$0xff] %v900
      %1157 = vst [vmem:[%s211 + $0x580] sm:$0xff] %v901
      %1158 = vst [vmem:[%s211 + $0x588] sm:$0xff] %v902
      %1159 = vst [vmem:[%s211 + $0x590] sm:$0xff] %v903
      %1160 = vst [vmem:[%s211 + $0x598] sm:$0xff] %v904
      %1161 = vst [vmem:[%s211 + $0x5a0] sm:$0xff] %v905
      %1162 = vst [vmem:[%s211 + $0x5a8] sm:$0xff] %v906
      %1163 = vst [vmem:[%s211 + $0x5b0] sm:$0xff] %v907
      %1164 = vst [vmem:[%s211 + $0x5b8] sm:$0xff] %v908
      %1165 = vst [vmem:[%s211 + $0x5c0] sm:$0xff] %v909
      %1166 = vst [vmem:[%s211 + $0x5c8] sm:$0xff] %v910
      %1167 = vst [vmem:[%s211 + $0x5d0] sm:$0xff] %v911
      %1168 = vst [vmem:[%s211 + $0x5d8] sm:$0xff] %v912
      %1169 = vst [vmem:[%s211 + $0x5e0] sm:$0xff] %v913
      %1170 = vst [vmem:[%s211 + $0x5e8] sm:$0xff] %v914
      %1171 = vst [vmem:[%s211 + $0x5f0] sm:$0xff] %v915
      %1172 = vst [vmem:[%s211 + $0x5f8] sm:$0xff] %v916
      %1173 = vst [vmem:[%s211 + $0x600] sm:$0xff] %v917
      %1174 = vst [vmem:[%s211 + $0x608] sm:$0xff] %v918
      %1175 = vst [vmem:[%s211 + $0x610] sm:$0xff] %v919
      %1176 = vst [vmem:[%s211 + $0x618] sm:$0xff] %v920
      %1177 = vst [vmem:[%s211 + $0x620] sm:$0xff] %v921
      %1178 = vst [vmem:[%s211 + $0x628] sm:$0xff] %v922
      %1179 = vst [vmem:[%s211 + $0x630] sm:$0xff] %v923
      %1180 = vst [vmem:[%s211 + $0x638] sm:$0xff] %v924
      %1181 = vst [vmem:[%s211 + $0x640] sm:$0xff] %v925
      %1182 = vst [vmem:[%s211 + $0x648] sm:$0xff] %v926
      %1183 = vst [vmem:[%s211 + $0x650] sm:$0xff] %v927
      %1184 = vst [vmem:[%s211 + $0x658] sm:$0xff] %v928
      %1185 = vst [vmem:[%s211 + $0x660] sm:$0xff] %v929
      %1186 = vst [vmem:[%s211 + $0x668] sm:$0xff] %v930
      %1187 = vst [vmem:[%s211 + $0x670] sm:$0xff] %v931
      %1188 = vst [vmem:[%s211 + $0x678] sm:$0xff] %v932
      %1189 = vst [vmem:[%s211 + $0x680] sm:$0xff] %v933
      %1190 = vst [vmem:[%s211 + $0x688] sm:$0xff] %v934
      %1191 = vst [vmem:[%s211 + $0x690] sm:$0xff] %v935
      %1192 = vst [vmem:[%s211 + $0x698] sm:$0xff] %v936
      %1193 = vst [vmem:[%s211 + $0x6a0] sm:$0xff] %v937
      %1194 = vst [vmem:[%s211 + $0x6a8] sm:$0xff] %v938
      %1195 = vst [vmem:[%s211 + $0x6b0] sm:$0xff] %v939
      %1196 = vst [vmem:[%s211 + $0x6b8] sm:$0xff] %v940
      %1197 = vst [vmem:[%s211 + $0x6c0] sm:$0xff] %v941
      %1198 = vst [vmem:[%s211 + $0x6c8] sm:$0xff] %v942
      %1199 = vst [vmem:[%s211 + $0x6d0] sm:$0xff] %v943
      %1200 = vst [vmem:[%s211 + $0x6d8] sm:$0xff] %v944
      %1201 = vst [vmem:[%s211 + $0x6e0] sm:$0xff] %v945
      %1202 = vst [vmem:[%s211 + $0x6e8] sm:$0xff] %v946
      %1203 = vst [vmem:[%s211 + $0x6f0] sm:$0xff] %v947
      %1204 = vst [vmem:[%s211 + $0x6f8] sm:$0xff] %v948
      %1205 = vst [vmem:[%s211 + $0x700] sm:$0xff] %v949
      %1206 = vst [vmem:[%s211 + $0x708] sm:$0xff] %v950
      %1207 = vst [vmem:[%s211 + $0x710] sm:$0xff] %v951
      %1208 = vst [vmem:[%s211 + $0x718] sm:$0xff] %v952
      %1209 = vst [vmem:[%s211 + $0x720] sm:$0xff] %v953
      %1210 = vst [vmem:[%s211 + $0x728] sm:$0xff] %v954
      %1211 = vst [vmem:[%s211 + $0x730] sm:$0xff] %v955
      %1212 = vst [vmem:[%s211 + $0x738] sm:$0xff] %v956
      %1213 = vst [vmem:[%s211 + $0x740] sm:$0xff] %v957
      %1214 = vst [vmem:[%s211 + $0x748] sm:$0xff] %v958
      %1215 = vst [vmem:[%s211 + $0x750] sm:$0xff] %v959
      %1216 = vst [vmem:[%s211 + $0x758] sm:$0xff] %v960
      %1217 = vst [vmem:[%s211 + $0x760] sm:$0xff] %v961
      %1218 = vst [vmem:[%s211 + $0x768] sm:$0xff] %v962
      %1219 = vst [vmem:[%s211 + $0x770] sm:$0xff] %v963
      %1220 = vst [vmem:[%s211 + $0x778] sm:$0xff] %v964
      %1221 = vst [vmem:[%s211 + $0x780] sm:$0xff] %v965
      %1222 = vst [vmem:[%s211 + $0x788] sm:$0xff] %v966
      %1223 = vst [vmem:[%s211 + $0x790] sm:$0xff] %v967
      %1224 = vst [vmem:[%s211 + $0x798] sm:$0xff] %v968
      %1225 = vst [vmem:[%s211 + $0x7a0] sm:$0xff] %v969
      %1226 = vst [vmem:[%s211 + $0x7a8] sm:$0xff] %v970
      %1227 = vst [vmem:[%s211 + $0x7b0] sm:$0xff] %v971
      %1228 = vst [vmem:[%s211 + $0x7b8] sm:$0xff] %v972
      %1229 = vst [vmem:[%s211 + $0x7c0] sm:$0xff] %v973
      %1230 = vst [vmem:[%s211 + $0x7c8] sm:$0xff] %v974
      %1231 = vst [vmem:[%s211 + $0x7d0] sm:$0xff] %v975
      %1232 = vst [vmem:[%s211 + $0x7d8] sm:$0xff] %v976
      %1233 = vst [vmem:[%s211 + $0x7e0] sm:$0xff] %v977
      %1234 = vst [vmem:[%s211 + $0x7e8] sm:$0xff] %v978
      %1235 = vst [vmem:[%s211 + $0x7f0] sm:$0xff] %v979
      %1236 = vst [vmem:[%s211 + $0x7f8] sm:$0xff] %v980
      %s1237 = smul.u32 8, %s17
      %p1238 = scmp.lt.s32.totalorder %s18, 1
      %s1239 = scalar_select %p1238, %s18, 1
      %p1240 = scmp.lt.s32.totalorder %s1237, 7
      %s1241 = scalar_select %p1240, %s1237, 7
      %s1242 = smul.addr %s1241, 32
      %s1243 = smul.addr %s1239, 256
      %s1244 = sadd.s32 %s1242, %s1243
      %s1245 = smul.addr %s1244, 8
      %s1246 = scalar_lea.vmem %s2, %s1245
      // Predicated region
      $region29: #{spatiotemporal_positional_encoding.1} parent=27 // pred_check
        %p1247 = pneg %p99
      $region30: #{spatiotemporal_positional_encoding.1} parent=27 // pred_check_branch
        %1249 = sbr.rel (%p1247) target = $region32
      $region31: #{spatiotemporal_positional_encoding.1} parent=27 // pred_region
        %s1250 = smul.u32 8, %s17
      $region32: #{spatiotemporal_positional_encoding.1} parent=27 // pred_fallthru
        _
    $region28: #{spatiotemporal_positional_encoding.1} parent=5 // pred_fallthru
      _
    %p1251 = scmp.le.s32.totalorder 2, %s8
    // Predicated region
    $region33: #{spatiotemporal_positional_encoding.1} parent=5 // pred_check
      %p1252 = pneg %p1251
    $region34: #{spatiotemporal_positional_encoding.1} parent=5 // pred_check_branch
      %1254 = sbr.rel (%p1252) target = $region36
    $region35: #{spatiotemporal_positional_encoding.1} parent=5 // pred_region
      %s1255 = ssub.s32 %s8, 2
      // Predicated region
      $region37: #{spatiotemporal_positional_encoding.1} parent=35 // pred_check
        %p1256 = pneg %p105
      $region38: #{spatiotemporal_positional_encoding.1} parent=35 // pred_check_branch
        %1258 = sbr.rel (%p1256) target = $region40
      $region39: #{spatiotemporal_positional_encoding.1} parent=35 // pred_region
        %s1259 = smul.u32 8, %s19
        %p1260 = scmp.lt.s32.totalorder %s20, 1
        %s1261 = scalar_select %p1260, %s20, 1
        %p1262 = scmp.lt.s32.totalorder %s1259, 7
        %s1263 = scalar_select %p1262, %s1259, 7
        %s1264 = smul.addr %s1263, 32
        %s1265 = smul.addr %s1261, 256
        %s1266 = sadd.s32 %s1264, %s1265
        %s1267 = smul.addr %s1266, 8
        %s1268 = scalar_lea.vmem %s2, %s1267
      $region40: #{spatiotemporal_positional_encoding.1} parent=35 // pred_fallthru
        _
    $region36: #{spatiotemporal_positional_encoding.1} parent=5 // pred_fallthru
      _
  $region6: #{spatiotemporal_positional_encoding.1} parent=0 // loop_footer
    %s12 = sadd.s32 1, %s8
  $region7: #{spatiotemporal_positional_encoding.1} parent=0 // loop_footer_branch
    %7 = sbr.rel target = $region3
  $region8: #{spatiotemporal_positional_encoding.1} parent=0 // loop_exit
    _

</llo_original>
